<compile_context>
chip_gen: v5e
topology: v5e:2x2
jax: 0.10.0
libtpu: 0.0.40
codegen_flags: <defaults>
</compile_context>

<pallas_src>
import functools

import jax
import jax.numpy as jnp
from jax.experimental import pallas as pl
from jax.experimental.pallas import tpu as pltpu


# Scoped-VMEM budget. 48 MiB is safe on every generation (v7x has 64 MiB per
# TensorCore); on v5e/v6e (128 MiB physical) this could be raised to ~96 MiB.
_VMEM_LIMIT = 48 * 1024 * 1024
_TILE_VMEM_BUDGET = 36 * 1024 * 1024  # what the tile-size heuristics plan against


# ------------------------------ tiling helpers ------------------------------

def _tile(dim, cap):
    """Largest divisor of `dim` that is <= cap, preferring MXU / bf16-sublane
    friendly alignments (256, 128, 16, 8)."""
    cap = max(int(cap), 1)
    if dim <= cap:
        return dim
    best = {256: 0, 128: 0, 16: 0, 8: 0, 1: 0}
    for t in range(1, cap + 1):
        if dim % t == 0:
            for a in best:
                if t % a == 0:
                    best[a] = t
    for a in (256, 128, 16, 8, 1):
        if best[a]:
            return best[a]
    return dim


def _dense_tm(M, K, N):
    """Pick the M tile for a weight-resident dense: weight (K,N) bf16 is double
    buffered in VMEM; the rest of the budget goes to x / out tiles and the f32
    epilogue temporary."""
    fixed = 2 * K * N * 2 + 4 * N                   # weight (x2 buffers) + bias
    per_row = 2 * K * 2 + 2 * N * 2 + N * 4         # x, out (dbl-buf bf16) + f32 temp
    assert fixed < _TILE_VMEM_BUDGET, (
        "weight does not fit in VMEM for residency; add an N/K-tiled fallback")
    avail = _TILE_VMEM_BUDGET - fixed
    cap = max(min(avail // per_row, 2048), 64)
    return _tile(M, cap)


def _attn_tq(S, nh):
    """q-tile so that the (nh, tq, S) f32 score/prob temporaries stay bounded."""
    cap = max(_TILE_VMEM_BUDGET // 2 // max(nh * S * 8, 1), 16)
    return _tile(S, min(cap, 512))


def _gelu_tanh(x):
    # TODO(synk): HF BERT uses exact erf-GELU; tanh approximation kept here for
    # guaranteed TPU lowering (EUP tanh).  Divergence is ~1e-3 relative.
    return 0.5 * x * (1.0 + jnp.tanh(0.7978845608028654 * (x + 0.044715 * x * x * x)))


# ------------------------- dense (weight-resident) ---------------------------

def _dense_kernel(x_ref, w_ref, b_ref, o_ref, *, act):
    y = jnp.dot(x_ref[...], w_ref[...], preferred_element_type=jnp.float32)
    y = y + b_ref[...].astype(jnp.float32)
    if act == "gelu":
        y = _gelu_tanh(y)
    elif act == "tanh":
        y = jnp.tanh(y)
    o_ref[...] = y.astype(o_ref.dtype)


def dense(x, w, b, act=None, out_dtype=None):
    """y = act(x @ w + b).  Weight is VMEM-resident (DMA'd once); only M tiled."""
    M, K = x.shape
    N = w.shape[1]
    out_dtype = out_dtype or x.dtype
    tm = _dense_tm(M, K, N)
    return pl.pallas_call(
        functools.partial(_dense_kernel, act=act),
        out_shape=jax.ShapeDtypeStruct((M, N), out_dtype),
        grid=(M // tm,),
        in_specs=[pl.BlockSpec((tm, K), lambda i: (i, 0)),
                  pl.BlockSpec((K, N), lambda i: (0, 0)),      # resident weight
                  pl.BlockSpec((1, N), lambda i: (0, 0))],
        out_specs=pl.BlockSpec((tm, N), lambda i: (i, 0)),
        compiler_params=pltpu.CompilerParams(
            dimension_semantics=("parallel",),
            vmem_limit_bytes=_VMEM_LIMIT),
    )(x, w, b.reshape(1, N))


# ---------------- dense + residual + LayerNorm fused epilogue ----------------

def _dense_res_ln_kernel(x_ref, w_ref, b_ref, r_ref, g_ref, beta_ref, o_ref, *, eps):
    y = jnp.dot(x_ref[...], w_ref[...], preferred_element_type=jnp.float32)
    y = y + b_ref[...].astype(jnp.float32) + r_ref[...].astype(jnp.float32)
    mu = jnp.mean(y, axis=-1, keepdims=True)
    var = jnp.mean((y - mu) ** 2, axis=-1, keepdims=True)
    yn = (y - mu) * jax.lax.rsqrt(var + eps)
    o_ref[...] = (yn * g_ref[...].astype(jnp.float32)
                  + beta_ref[...].astype(jnp.float32)).astype(o_ref.dtype)


def dense_residual_layernorm(x, w, b, residual, gamma, beta, eps=1e-12):
    """LayerNorm((x @ w + b) + residual) with a VMEM-resident (K, N) weight."""
    M, K = x.shape
    N = w.shape[1]
    out_dtype = residual.dtype
    tm = _dense_tm(M, K, N)
    return pl.pallas_call(
        functools.partial(_dense_res_ln_kernel, eps=eps),
        out_shape=jax.ShapeDtypeStruct((M, N), out_dtype),
        grid=(M // tm,),
        in_specs=[pl.BlockSpec((tm, K), lambda i: (i, 0)),
                  pl.BlockSpec((K, N), lambda i: (0, 0)),      # resident weight
                  pl.BlockSpec((1, N), lambda i: (0, 0)),
                  pl.BlockSpec((tm, N), lambda i: (i, 0)),
                  pl.BlockSpec((1, N), lambda i: (0, 0)),
                  pl.BlockSpec((1, N), lambda i: (0, 0))],
        out_specs=pl.BlockSpec((tm, N), lambda i: (i, 0)),
        compiler_params=pltpu.CompilerParams(
            dimension_semantics=("parallel",),
            vmem_limit_bytes=_VMEM_LIMIT),
    )(x, w, b.reshape(1, N), residual, gamma.reshape(1, N), beta.reshape(1, N))


# ---- attention-output projection + residual + LayerNorm, head-reduction -----
# Consumes ctx in (B, nh, S, hd) layout directly (no XLA head-merge transpose);
# the head axis is the reduction grid axis and wo is viewed as (nh, hd, H).

def _attn_out_res_ln_kernel(ctx_ref, w_ref, b_ref, r_ref, g_ref, beta_ref,
                            o_ref, acc_ref, *, eps):
    h = pl.program_id(2)

    @pl.when(h == 0)
    def _():
        acc_ref[...] = jnp.zeros_like(acc_ref)

    acc_ref[...] += jnp.dot(ctx_ref[0, 0], w_ref[0],
                            preferred_element_type=jnp.float32)

    @pl.when(h == pl.num_programs(2) - 1)
    def _():
        y = (acc_ref[...] + b_ref[...].astype(jnp.float32)
             + r_ref[0].astype(jnp.float32))
        mu = jnp.mean(y, axis=-1, keepdims=True)
        var = jnp.mean((y - mu) ** 2, axis=-1, keepdims=True)
        yn = (y - mu) * jax.lax.rsqrt(var + eps)
        o_ref[0] = (yn * g_ref[...].astype(jnp.float32)
                    + beta_ref[...].astype(jnp.float32)).astype(o_ref.dtype)


def attn_out_residual_layernorm(ctx, wo, bo, residual, gamma, beta, eps=1e-12):
    """LayerNorm(concat_heads(ctx) @ wo + bo + residual) without the XLA merge."""
    B, nh, S, hd = ctx.shape
    H = wo.shape[1]
    wo_h = wo.reshape(nh, hd, H)                 # per-head slices of the output weight
    res = residual.reshape(B, S, H)
    ts = _tile(S, 512)
    out = pl.pallas_call(
        functools.partial(_attn_out_res_ln_kernel, eps=eps),
        out_shape=jax.ShapeDtypeStruct((B, S, H), residual.dtype),
        grid=(B, S // ts, nh),
        in_specs=[pl.BlockSpec((1, 1, ts, hd), lambda b, si, h: (b, h, si, 0)),
                  pl.BlockSpec((1, hd, H), lambda b, si, h: (h, 0, 0)),
                  pl.BlockSpec((1, H), lambda b, si, h: (0, 0)),
                  pl.BlockSpec((1, ts, H), lambda b, si, h: (b, si, 0)),
                  pl.BlockSpec((1, H), lambda b, si, h: (0, 0)),
                  pl.BlockSpec((1, H), lambda b, si, h: (0, 0))],
        out_specs=pl.BlockSpec((1, ts, H), lambda b, si, h: (b, si, 0)),
        scratch_shapes=[pltpu.VMEM((ts, H), jnp.float32)],
        compiler_params=pltpu.CompilerParams(
            dimension_semantics=("parallel", "parallel", "arbitrary"),
            vmem_limit_bytes=_VMEM_LIMIT),
    )(ctx, wo_h, bo.reshape(1, H), res, gamma.reshape(1, H), beta.reshape(1, H))
    return out.reshape(B * S, H)


# ------------------------------ layernorm (emb) -------------------------------

def _layernorm_kernel(x_ref, g_ref, b_ref, o_ref, *, eps):
    x = x_ref[...].astype(jnp.float32)
    mu = jnp.mean(x, axis=-1, keepdims=True)
    var = jnp.mean((x - mu) ** 2, axis=-1, keepdims=True)
    y = (x - mu) * jax.lax.rsqrt(var + eps)
    o_ref[...] = (y * g_ref[...].astype(jnp.float32)
                  + b_ref[...].astype(jnp.float32)).astype(o_ref.dtype)


def layernorm(x, gamma, beta, eps=1e-12):
    M, H = x.shape
    tm = _tile(M, 1024)
    return pl.pallas_call(
        functools.partial(_layernorm_kernel, eps=eps),
        out_shape=jax.ShapeDtypeStruct((M, H), x.dtype),
        grid=(M // tm,),
        in_specs=[pl.BlockSpec((tm, H), lambda i: (i, 0)),
                  pl.BlockSpec((1, H), lambda i: (0, 0)),
                  pl.BlockSpec((1, H), lambda i: (0, 0))],
        out_specs=pl.BlockSpec((tm, H), lambda i: (i, 0)),
        compiler_params=pltpu.CompilerParams(
            dimension_semantics=("parallel",), vmem_limit_bytes=_VMEM_LIMIT),
    )(x, gamma.reshape(1, H), beta.reshape(1, H))


# ------------------------- attention (heads batched) --------------------------
# One grid step per (batch, q-tile): all heads in one block, full K/V per batch
# element resident in VMEM (index_map constant over the q axis), single-pass
# softmax (BERT's S <= 512 K/V always fits, so no online-softmax machinery).

def _attn_kernel(q_ref, k_ref, v_ref, m_ref, o_ref, *, scale):
    q = q_ref[0]                                   # (nh, tq, hd)  bf16
    k = k_ref[0]                                   # (nh, S,  hd)  bf16
    v = v_ref[0]                                   # (nh, S,  hd)  bf16

    s = jnp.einsum('hqd,hkd->hqk', q, k,
                   preferred_element_type=jnp.float32) * scale
    s = s + m_ref[0]                               # (1, S) additive mask broadcast

    m = jnp.max(s, axis=-1, keepdims=True)
    p = jnp.exp(s - m)
    denom = jnp.sum(p, axis=-1, keepdims=True)
    ctx = jnp.einsum('hqk,hkd->hqd', p.astype(v.dtype), v,
                     preferred_element_type=jnp.float32)
    # exact reciprocal (denom >= 1); cost is negligible on the (nh, tq, 1) array
    o_ref[0] = (ctx * (1.0 / denom)).astype(o_ref.dtype)
    # TODO(synk): output last dim hd (< 128) is not lane-dense; writing a
    # token-major (tq, H) layout would need an in-kernel head transpose.


def attention(q, k, v, ext_mask, scale):
    """q,k,v: (B, nh, S, hd); ext_mask: (B, 1, S) additive f32 -> (B, nh, S, hd)."""
    B, nh, S, hd = q.shape
    tq = _attn_tq(S, nh)
    q_spec = pl.BlockSpec((1, nh, tq, hd), lambda b, qi: (b, 0, qi, 0))
    kv_spec = pl.BlockSpec((1, nh, S, hd), lambda b, qi: (b, 0, 0, 0))
    return pl.pallas_call(
        functools.partial(_attn_kernel, scale=scale),
        out_shape=jax.ShapeDtypeStruct((B, nh, S, hd), q.dtype),
        grid=(B, S // tq),
        in_specs=[q_spec, kv_spec, kv_spec,
                  pl.BlockSpec((1, 1, S), lambda b, qi: (b, 0, 0))],
        out_specs=pl.BlockSpec((1, nh, tq, hd), lambda b, qi: (b, 0, qi, 0)),
        compiler_params=pltpu.CompilerParams(
            dimension_semantics=("parallel", "parallel"),
            vmem_limit_bytes=_VMEM_LIMIT),
    )(q, k, v, ext_mask)


# --------------- fused pooler + classifier + cross-entropy head ---------------

def _head_kernel(cls_ref, pw_ref, pb_ref, cw_ref, cb_ref, oh_ref,
                 logits_ref, loss_ref, *, batch):
    pooled = jnp.tanh(
        jnp.dot(cls_ref[...], pw_ref[...], preferred_element_type=jnp.float32)
        + pb_ref[...].astype(jnp.float32))
    logits = (jnp.dot(pooled.astype(cw_ref.dtype), cw_ref[...],
                      preferred_element_type=jnp.float32)
              + cb_ref[...].astype(jnp.float32))
    logits_ref[...] = logits.astype(logits_ref.dtype)

    z = logits - jnp.max(logits, axis=-1, keepdims=True)
    lse = jnp.log(jnp.sum(jnp.exp(z), axis=-1, keepdims=True))
    nll = -jnp.sum(oh_ref[...].astype(jnp.float32) * (z - lse))
    # valid because the full batch sits in a single block.
    loss_ref[...] = (nll / batch).reshape(1, 1)


def classifier_head(cls_hidden, pool_w, pool_b, cls_w, cls_b, onehot):
    B, H = cls_hidden.shape
    L = cls_w.shape[1]
    logits, loss = pl.pallas_call(
        functools.partial(_head_kernel, batch=B),
        out_shape=(jax.ShapeDtypeStruct((B, L), jnp.float32),
                   jax.ShapeDtypeStruct((1, 1), jnp.float32)),
        grid=(1,),
        in_specs=[pl.BlockSpec((B, H), lambda i: (0, 0)),
                  pl.BlockSpec((H, H), lambda i: (0, 0)),
                  pl.BlockSpec((1, H), lambda i: (0, 0)),
                  pl.BlockSpec((H, L), lambda i: (0, 0)),
                  pl.BlockSpec((1, L), lambda i: (0, 0)),
                  pl.BlockSpec((B, L), lambda i: (0, 0))],
        out_specs=(pl.BlockSpec((B, L), lambda i: (0, 0)),
                   pl.BlockSpec((1, 1), lambda i: (0, 0))),
        compiler_params=pltpu.CompilerParams(
            dimension_semantics=("arbitrary",), vmem_limit_bytes=_VMEM_LIMIT),
    )(cls_hidden, pool_w, pool_b.reshape(1, H), cls_w, cls_b.reshape(1, L), onehot)
    return logits, loss[0, 0]


# ------------------------------ model assembly --------------------------------

def init_params(key, *, vocab, hidden, intermediate, num_layers, max_pos,
                type_vocab, num_labels, dtype=jnp.bfloat16):
    keys = iter(jax.random.split(key, 8 + 8 * num_layers))

    def nrm(shape):
        return (0.02 * jax.random.normal(next(keys), shape, jnp.float32)).astype(dtype)

    ones = lambda n: jnp.ones((n,), dtype)
    zeros = lambda n: jnp.zeros((n,), dtype)

    params = {
        'word_emb': nrm((vocab, hidden)),
        'pos_emb': nrm((max_pos, hidden)),
        'type_emb': nrm((type_vocab, hidden)),
        'emb_ln_g': ones(hidden), 'emb_ln_b': zeros(hidden),
        'pool_w': nrm((hidden, hidden)), 'pool_b': zeros(hidden),
        'cls_w': nrm((hidden, num_labels)), 'cls_b': zeros(num_labels),
        'layers': [],
    }
    for _ in range(num_layers):
        # Q/K/V weights fused once at init (bf16) -> one matmul per layer.
        params['layers'].append({
            'w_qkv': nrm((hidden, 3 * hidden)), 'b_qkv': zeros(3 * hidden),
            'wo': nrm((hidden, hidden)), 'bo': zeros(hidden),
            'ln1_g': ones(hidden), 'ln1_b': zeros(hidden),
            'wi': nrm((hidden, intermediate)), 'bi': zeros(intermediate),
            'wf': nrm((intermediate, hidden)), 'bf': zeros(hidden),
            'ln2_g': ones(hidden), 'ln2_b': zeros(hidden),
        })
    return params


@functools.partial(jax.jit, static_argnames=("num_heads",))
def _forward(params, input_ids, attention_mask, token_type_ids, onehot, *, num_heads):
    B, S = input_ids.shape
    H = params['word_emb'].shape[1]
    hd = H // num_heads

    # --- embeddings (gather = JAX glue) + LayerNorm (Pallas) ---
    emb = (jnp.take(params['word_emb'], input_ids, axis=0)
           + params['pos_emb'][:S][None, :, :]
           + jnp.take(params['type_emb'], token_type_ids, axis=0))
    x = layernorm(emb.reshape(B * S, H), params['emb_ln_g'], params['emb_ln_b'])

    # HF-style extended additive attention mask, f32
    ext_mask = ((1.0 - attention_mask.astype(jnp.float32)) * -10000.0).reshape(B, 1, S)
    scale = 1.0 / float(hd) ** 0.5

    for lp in params['layers']:
        # fused QKV projection: one (H, 3H) weight-resident matmul
        qkv = dense(x, lp['w_qkv'], lp['b_qkv'])                  # (B*S, 3H)
        # TODO(synk): this head-split transpose is the one remaining per-layer
        # XLA relayout; removing it needs lane-sliced heads inside the kernel.
        qkv = qkv.reshape(B, S, 3, num_heads, hd).transpose(2, 0, 3, 1, 4)
        q, k, v = qkv[0], qkv[1], qkv[2]                          # (B, nh, S, hd)

        ctx = attention(q, k, v, ext_mask, scale)                 # (B, nh, S, hd)

        # attention output projection + residual + LayerNorm (fused, consumes
        # ctx in (B, nh, S, hd) layout -> no head-merge transpose)
        x = attn_out_residual_layernorm(ctx, lp['wo'], lp['bo'], x,
                                        lp['ln1_g'], lp['ln1_b'])
        # FFN up-projection with GELU epilogue (weight-resident)
        h = dense(x, lp['wi'], lp['bi'], act='gelu')
        # FFN down-projection + residual + LayerNorm (fused, weight-resident)
        x = dense_residual_layernorm(h, lp['wf'], lp['bf'], x,
                                     lp['ln2_g'], lp['ln2_b'])

    # --- pooler (tanh on [CLS]) + classifier + CE, fused into one kernel ---
    cls_hidden = x.reshape(B, S, H)[:, 0, :]
    logits, loss = classifier_head(cls_hidden, params['pool_w'], params['pool_b'],
                                   params['cls_w'], params['cls_b'], onehot)
    return loss, logits


def bert_classifier_forward(params, input_ids, attention_mask=None,
                            token_type_ids=None, labels=None, *,
                            num_heads, num_labels):
    B, S = input_ids.shape
    if attention_mask is None:
        attention_mask = jnp.ones((B, S), jnp.int32)
    if token_type_ids is None:
        token_type_ids = jnp.zeros((B, S), jnp.int32)
    if labels is not None:
        onehot = jax.nn.one_hot(labels, num_labels, dtype=jnp.float32)
    else:
        onehot = jnp.zeros((B, num_labels), jnp.float32)
    loss, logits = _forward(params, input_ids, attention_mask, token_type_ids,
                            onehot, num_heads=num_heads)
    return (loss if labels is not None else None), logits


# ----------------------------------- main -------------------------------------

if __name__ == "__main__":
    # Small BERT config consistent with the module's forward signature.
    VOCAB, HIDDEN, INTER, LAYERS, HEADS = 100, 32, 64, 2, 2
    MAX_POS, TYPE_VOCAB, NUM_LABELS = 16, 2, 3
    B, S = 2, 8

    root = jax.random.PRNGKey(0)
    kp, k1, k2 = jax.random.split(root, 3)

    params = init_params(kp, vocab=VOCAB, hidden=HIDDEN, intermediate=INTER,
                         num_layers=LAYERS, max_pos=MAX_POS,
                         type_vocab=TYPE_VOCAB, num_labels=NUM_LABELS)

    input_ids = jax.random.randint(k1, (B, S), 0, VOCAB, dtype=jnp.int32)
    attention_mask = jnp.ones((B, S), jnp.int32).at[1, -2:].set(0)  # pad 2 tokens
    token_type_ids = jnp.zeros((B, S), jnp.int32)
    labels = jax.random.randint(k2, (B,), 0, NUM_LABELS, dtype=jnp.int32)

    loss, logits = bert_classifier_forward(
        params, input_ids, attention_mask=attention_mask,
        token_type_ids=token_type_ids, labels=labels,
        num_heads=HEADS, num_labels=NUM_LABELS)

    jax.block_until_ready((loss, logits))
    assert logits.shape == (B, NUM_LABELS)
    assert loss.shape == ()
    assert bool(jnp.isfinite(loss))
    print("KERNEL_OK")
</pallas_src>

<mosaic_0001>
module attributes {stable_mosaic.version = 11 : i64} {
  func.func @_layernorm_kernel(%arg0: i32, %arg1: memref<16x32xbf16, #tpu.memory_space<vmem>>, %arg2: memref<1x32xbf16, #tpu.memory_space<vmem>>, %arg3: memref<1x32xbf16, #tpu.memory_space<vmem>>, %arg4: memref<16x32xbf16, #tpu.memory_space<vmem>>) attributes {dimension_semantics = [#tpu.dimension_semantics<parallel>], iteration_bounds = array<i64: 1>, scalar_prefetch = 0 : i64, scratch_operands = 0 : i64, tpu.core_type = #tpu.core_type<tc>, window_params = [{transform_indices = @transform_0, window_bounds = array<i64: 16, 32>}, {pipeline_mode = #tpu.pipeline_mode<synchronous>, transform_indices = @transform_1, window_bounds = array<i64: 1, 32>}, {pipeline_mode = #tpu.pipeline_mode<synchronous>, transform_indices = @transform_2, window_bounds = array<i64: 1, 32>}, {transform_indices = @transform_3, window_bounds = array<i64: 16, 32>}]} {
    %c0 = arith.constant 0 : index
    %c0_0 = arith.constant 0 : index
    %0 = vector.load %arg1[%c0, %c0_0] : memref<16x32xbf16, #tpu.memory_space<vmem>>, vector<16x32xbf16>
    %1 = arith.extf %0 : vector<16x32xbf16> to vector<16x32xf32>
    %cst = arith.constant dense<0.000000e+00> : vector<16xf32>
    %2 = vector.multi_reduction <add>, %1, %cst [1] : vector<16x32xf32> to vector<16xf32>
    %3 = vector.shape_cast %2 : vector<16xf32> to vector<16x1xf32>
    %cst_1 = arith.constant 3.200000e+01 : f32
    %4 = vector.broadcast %cst_1 : f32 to vector<16x1xf32>
    %5 = arith.divf %3, %4 : vector<16x1xf32>
    %6 = vector.broadcast %5 : vector<16x1xf32> to vector<16x32xf32>
    %7 = arith.subf %1, %6 : vector<16x32xf32>
    %8 = arith.mulf %7, %7 : vector<16x32xf32>
    %cst_2 = arith.constant dense<0.000000e+00> : vector<16xf32>
    %9 = vector.multi_reduction <add>, %8, %cst_2 [1] : vector<16x32xf32> to vector<16xf32>
    %10 = vector.shape_cast %9 : vector<16xf32> to vector<16x1xf32>
    %cst_3 = arith.constant 3.200000e+01 : f32
    %11 = vector.broadcast %cst_3 : f32 to vector<16x1xf32>
    %12 = arith.divf %10, %11 : vector<16x1xf32>
    %13 = vector.broadcast %5 : vector<16x1xf32> to vector<16x32xf32>
    %14 = arith.subf %1, %13 : vector<16x32xf32>
    %cst_4 = arith.constant 9.99999996E-13 : f32
    %15 = vector.broadcast %cst_4 : f32 to vector<16x1xf32>
    %16 = arith.addf %12, %15 : vector<16x1xf32>
    %17 = math.rsqrt %16 : vector<16x1xf32>
    %18 = vector.broadcast %17 : vector<16x1xf32> to vector<16x32xf32>
    %19 = arith.mulf %14, %18 : vector<16x32xf32>
    %c0_5 = arith.constant 0 : index
    %c0_6 = arith.constant 0 : index
    %20 = vector.load %arg2[%c0_5, %c0_6] : memref<1x32xbf16, #tpu.memory_space<vmem>>, vector<1x32xbf16>
    %21 = arith.extf %20 : vector<1x32xbf16> to vector<1x32xf32>
    %22 = vector.broadcast %21 : vector<1x32xf32> to vector<16x32xf32>
    %23 = arith.mulf %19, %22 : vector<16x32xf32>
    %c0_7 = arith.constant 0 : index
    %c0_8 = arith.constant 0 : index
    %24 = vector.load %arg3[%c0_7, %c0_8] : memref<1x32xbf16, #tpu.memory_space<vmem>>, vector<1x32xbf16>
    %25 = arith.extf %24 : vector<1x32xbf16> to vector<1x32xf32>
    %26 = vector.broadcast %25 : vector<1x32xf32> to vector<16x32xf32>
    %27 = arith.addf %23, %26 : vector<16x32xf32>
    %28 = arith.truncf %27 : vector<16x32xf32> to vector<16x32xbf16>
    %c0_9 = arith.constant 0 : index
    %c0_10 = arith.constant 0 : index
    %29 = vector.load %arg4[%c0_9, %c0_10] : memref<16x32xbf16, #tpu.memory_space<vmem>>, vector<16x32xbf16>
    tpu.vector_store %arg4[%c0_9, %c0_10], %28 {strides = array<i32>} : memref<16x32xbf16, #tpu.memory_space<vmem>>, vector<16x32xbf16>,
    return
  }
  func.func @transform_0(%arg0: i32) -> (i32, i32) {
    %c0_i32 = arith.constant 0 : i32
    %c0_i32_0 = arith.constant 0 : i32
    return %arg0, %c0_i32 : i32, i32
  }
  func.func @transform_1(%arg0: i32) -> (i32, i32) {
    %c0_i32 = arith.constant 0 : i32
    %c0_i32_0 = arith.constant 0 : i32
    %c0_i32_1 = arith.constant 0 : i32
    return %c0_i32, %c0_i32_0 : i32, i32
  }
  func.func @transform_2(%arg0: i32) -> (i32, i32) {
    %c0_i32 = arith.constant 0 : i32
    %c0_i32_0 = arith.constant 0 : i32
    %c0_i32_1 = arith.constant 0 : i32
    return %c0_i32, %c0_i32_0 : i32, i32
  }
  func.func @transform_3(%arg0: i32) -> (i32, i32) {
    %c0_i32 = arith.constant 0 : i32
    %c0_i32_0 = arith.constant 0 : i32
    return %arg0, %c0_i32 : i32, i32
  }
}

module attributes {stable_mosaic.version = 11 : i64} {
  func.func @_dense_kernel(%arg0: i32, %arg1: memref<16x32xbf16, #tpu.memory_space<vmem>>, %arg2: memref<32x96xbf16, #tpu.memory_space<vmem>>, %arg3: memref<1x96xbf16, #tpu.memory_space<vmem>>, %arg4: memref<16x96xbf16, #tpu.memory_space<vmem>>) attributes {dimension_semantics = [#tpu.dimension_semantics<parallel>], iteration_bounds = array<i64: 1>, scalar_prefetch = 0 : i64, scratch_operands = 0 : i64, tpu.core_type = #tpu.core_type<tc>, window_params = [{transform_indices = @transform_0, window_bounds = array<i64: 16, 32>}, {pipeline_mode = #tpu.pipeline_mode<synchronous>, transform_indices = @transform_1, window_bounds = array<i64: 32, 96>}, {pipeline_mode = #tpu.pipeline_mode<synchronous>, transform_indices = @transform_2, window_bounds = array<i64: 1, 96>}, {transform_indices = @transform_3, window_bounds = array<i64: 16, 96>}]} {
    %c0 = arith.constant 0 : index
    %c0_0 = arith.constant 0 : index
    %0 = vector.load %arg1[%c0, %c0_0] : memref<16x32xbf16, #tpu.memory_space<vmem>>, vector<16x32xbf16>
    %c0_1 = arith.constant 0 : index
    %c0_2 = arith.constant 0 : index
    %1 = vector.load %arg2[%c0_1, %c0_2] : memref<32x96xbf16, #tpu.memory_space<vmem>>, vector<32x96xbf16>
    %cst = arith.constant dense<0.000000e+00> : vector<16x96xf32>
    %2 = tpu.matmul %0, %1, %cst {dimension_numbers = #tpu.dot_dimension_numbers<[1], [0], [0], [1], [0, 0, 1, 1], [], []>} : vector<16x32xbf16>, vector<32x96xbf16>, vector<16x96xf32> -> vector<16x96xf32>
    %c0_3 = arith.constant 0 : index
    %c0_4 = arith.constant 0 : index
    %3 = vector.load %arg3[%c0_3, %c0_4] : memref<1x96xbf16, #tpu.memory_space<vmem>>, vector<1x96xbf16>
    %4 = arith.extf %3 : vector<1x96xbf16> to vector<1x96xf32>
    %5 = vector.broadcast %4 : vector<1x96xf32> to vector<16x96xf32>
    %6 = arith.addf %2, %5 : vector<16x96xf32>
    %7 = arith.truncf %6 : vector<16x96xf32> to vector<16x96xbf16>
    %c0_5 = arith.constant 0 : index
    %c0_6 = arith.constant 0 : index
    %8 = vector.load %arg4[%c0_5, %c0_6] : memref<16x96xbf16, #tpu.memory_space<vmem>>, vector<16x96xbf16>
    tpu.vector_store %arg4[%c0_5, %c0_6], %7 {strides = array<i32>} : memref<16x96xbf16, #tpu.memory_space<vmem>>, vector<16x96xbf16>,
    return
  }
  func.func @transform_0(%arg0: i32) -> (i32, i32) {
    %c0_i32 = arith.constant 0 : i32
    %c0_i32_0 = arith.constant 0 : i32
    return %arg0, %c0_i32 : i32, i32
  }
  func.func @transform_1(%arg0: i32) -> (i32, i32) {
    %c0_i32 = arith.constant 0 : i32
    %c0_i32_0 = arith.constant 0 : i32
    %c0_i32_1 = arith.constant 0 : i32
    return %c0_i32, %c0_i32_0 : i32, i32
  }
  func.func @transform_2(%arg0: i32) -> (i32, i32) {
    %c0_i32 = arith.constant 0 : i32
    %c0_i32_0 = arith.constant 0 : i32
    %c0_i32_1 = arith.constant 0 : i32
    return %c0_i32, %c0_i32_0 : i32, i32
  }
  func.func @transform_3(%arg0: i32) -> (i32, i32) {
    %c0_i32 = arith.constant 0 : i32
    %c0_i32_0 = arith.constant 0 : i32
    return %arg0, %c0_i32 : i32, i32
  }
}

module attributes {stable_mosaic.version = 11 : i64} {
  func.func @_attn_kernel(%arg0: i32, %arg1: i32, %arg2: memref<1x2x8x16xbf16, #tpu.memory_space<vmem>>, %arg3: memref<1x2x8x16xbf16, #tpu.memory_space<vmem>>, %arg4: memref<1x2x8x16xbf16, #tpu.memory_space<vmem>>, %arg5: memref<1x1x8xf32, #tpu.memory_space<vmem>>, %arg6: memref<1x2x8x16xbf16, #tpu.memory_space<vmem>>) attributes {dimension_semantics = [#tpu.dimension_semantics<parallel>, #tpu.dimension_semantics<parallel>], iteration_bounds = array<i64: 2, 1>, scalar_prefetch = 0 : i64, scratch_operands = 0 : i64, tpu.core_type = #tpu.core_type<tc>, window_params = [{transform_indices = @transform_0, window_bounds = array<i64: 1, 2, 8, 16>}, {transform_indices = @transform_1, window_bounds = array<i64: 1, 2, 8, 16>}, {transform_indices = @transform_2, window_bounds = array<i64: 1, 2, 8, 16>}, {transform_indices = @transform_3, window_bounds = array<i64: 1, 1, 8>}, {transform_indices = @transform_4, window_bounds = array<i64: 1, 2, 8, 16>}]} {
    %c0 = arith.constant 0 : index
    %c0_0 = arith.constant 0 : index
    %c0_1 = arith.constant 0 : index
    %c0_2 = arith.constant 0 : index
    %0 = vector.load %arg2[%c0, %c0_0, %c0_1, %c0_2] : memref<1x2x8x16xbf16, #tpu.memory_space<vmem>>, vector<1x2x8x16xbf16>
    %1 = vector.shape_cast %0 : vector<1x2x8x16xbf16> to vector<2x8x16xbf16>
    %c0_3 = arith.constant 0 : index
    %c0_4 = arith.constant 0 : index
    %c0_5 = arith.constant 0 : index
    %c0_6 = arith.constant 0 : index
    %2 = vector.load %arg3[%c0_3, %c0_4, %c0_5, %c0_6] : memref<1x2x8x16xbf16, #tpu.memory_space<vmem>>, vector<1x2x8x16xbf16>
    %3 = vector.shape_cast %2 : vector<1x2x8x16xbf16> to vector<2x8x16xbf16>
    %c0_7 = arith.constant 0 : index
    %c0_8 = arith.constant 0 : index
    %c0_9 = arith.constant 0 : index
    %c0_10 = arith.constant 0 : index
    %4 = vector.load %arg4[%c0_7, %c0_8, %c0_9, %c0_10] : memref<1x2x8x16xbf16, #tpu.memory_space<vmem>>, vector<1x2x8x16xbf16>
    %5 = vector.shape_cast %4 : vector<1x2x8x16xbf16> to vector<2x8x16xbf16>
    "tpu.trace_start"() <{level = 10 : i32, message = "hqd,hkd->hqk"}> : () -> ()
    %cst = arith.constant dense<0.000000e+00> : vector<2x8x8xf32>
    %6 = tpu.matmul %1, %3, %cst {dimension_numbers = #tpu.dot_dimension_numbers<[2], [2], [1], [1], [0, 0, 0, 1, 1, 1], [0], [0]>} : vector<2x8x16xbf16>, vector<2x8x16xbf16>, vector<2x8x8xf32> -> vector<2x8x8xf32>
    "tpu.trace_stop"() : () -> ()
    %cst_11 = arith.constant 2.500000e-01 : f32
    %7 = vector.broadcast %cst_11 : f32 to vector<2x8x8xf32>
    %8 = arith.mulf %6, %7 : vector<2x8x8xf32>
    %c0_12 = arith.constant 0 : index
    %c0_13 = arith.constant 0 : index
    %c0_14 = arith.constant 0 : index
    %9 = vector.load %arg5[%c0_12, %c0_13, %c0_14] : memref<1x1x8xf32, #tpu.memory_space<vmem>>, vector<1x1x8xf32>
    %10 = vector.shape_cast %9 : vector<1x1x8xf32> to vector<1x8xf32>
    %11 = vector.shape_cast %10 : vector<1x8xf32> to vector<1x1x8xf32>
    %12 = vector.broadcast %11 : vector<1x1x8xf32> to vector<2x8x8xf32>
    %13 = arith.addf %8, %12 : vector<2x8x8xf32>
    %cst_15 = arith.constant dense<0xFF800000> : vector<2x8xf32>
    %14 = vector.multi_reduction <maximumf>, %13, %cst_15 [2] : vector<2x8x8xf32> to vector<2x8xf32>
    %15 = vector.shape_cast %14 : vector<2x8xf32> to vector<2x8x1xf32>
    %16 = vector.broadcast %15 : vector<2x8x1xf32> to vector<2x8x8xf32>
    %17 = arith.subf %13, %16 : vector<2x8x8xf32>
    %18 = math.exp %17 : vector<2x8x8xf32>
    %cst_16 = arith.constant dense<0.000000e+00> : vector<2x8xf32>
    %19 = vector.multi_reduction <add>, %18, %cst_16 [2] : vector<2x8x8xf32> to vector<2x8xf32>
    %20 = vector.shape_cast %19 : vector<2x8xf32> to vector<2x8x1xf32>
    %21 = arith.truncf %18 : vector<2x8x8xf32> to vector<2x8x8xbf16>
    "tpu.trace_start"() <{level = 10 : i32, message = "hqk,hkd->hqd"}> : () -> ()
    %cst_17 = arith.constant dense<0.000000e+00> : vector<2x8x16xf32>
    %22 = tpu.matmul %21, %5, %cst_17 {dimension_numbers = #tpu.dot_dimension_numbers<[2], [1], [1], [2], [0, 0, 0, 1, 1, 2], [0], [0]>} : vector<2x8x8xbf16>, vector<2x8x16xbf16>, vector<2x8x16xf32> -> vector<2x8x16xf32>
    "tpu.trace_stop"() : () -> ()
    %cst_18 = arith.constant 1.000000e+00 : f32
    %23 = vector.broadcast %cst_18 : f32 to vector<2x8x1xf32>
    %24 = arith.divf %23, %20 : vector<2x8x1xf32>
    %25 = vector.broadcast %24 : vector<2x8x1xf32> to vector<2x8x16xf32>
    %26 = arith.mulf %22, %25 : vector<2x8x16xf32>
    %27 = arith.truncf %26 : vector<2x8x16xf32> to vector<2x8x16xbf16>
    %c0_19 = arith.constant 0 : index
    %c0_20 = arith.constant 0 : index
    %c0_21 = arith.constant 0 : index
    %c0_22 = arith.constant 0 : index
    %28 = vector.load %arg6[%c0_19, %c0_20, %c0_21, %c0_22] : memref<1x2x8x16xbf16, #tpu.memory_space<vmem>>, vector<1x2x8x16xbf16>
    %29 = vector.shape_cast %28 : vector<1x2x8x16xbf16> to vector<2x8x16xbf16>
    %30 = vector.shape_cast %27 : vector<2x8x16xbf16> to vector<1x2x8x16xbf16>
    tpu.vector_store %arg6[%c0_19, %c0_20, %c0_21, %c0_22], %30 {strides = array<i32>} : memref<1x2x8x16xbf16, #tpu.memory_space<vmem>>, vector<1x2x8x16xbf16>,
    return
  }
  func.func @transform_0(%arg0: i32, %arg1: i32) -> (i32, i32, i32, i32) {
    %c0_i32 = arith.constant 0 : i32
    %c0_i32_0 = arith.constant 0 : i32
    %c0_i32_1 = arith.constant 0 : i32
    return %arg0, %c0_i32, %arg1, %c0_i32_0 : i32, i32, i32, i32
  }
  func.func @transform_1(%arg0: i32, %arg1: i32) -> (i32, i32, i32, i32) {
    %c0_i32 = arith.constant 0 : i32
    %c0_i32_0 = arith.constant 0 : i32
    %c0_i32_1 = arith.constant 0 : i32
    %c0_i32_2 = arith.constant 0 : i32
    return %arg0, %c0_i32, %c0_i32_0, %c0_i32_1 : i32, i32, i32, i32
  }
  func.func @transform_2(%arg0: i32, %arg1: i32) -> (i32, i32, i32, i32) {
    %c0_i32 = arith.constant 0 : i32
    %c0_i32_0 = arith.constant 0 : i32
    %c0_i32_1 = arith.constant 0 : i32
    %c0_i32_2 = arith.constant 0 : i32
    return %arg0, %c0_i32, %c0_i32_0, %c0_i32_1 : i32, i32, i32, i32
  }
  func.func @transform_3(%arg0: i32, %arg1: i32) -> (i32, i32, i32) {
    %c0_i32 = arith.constant 0 : i32
    %c0_i32_0 = arith.constant 0 : i32
    %c0_i32_1 = arith.constant 0 : i32
    return %arg0, %c0_i32, %c0_i32_0 : i32, i32, i32
  }
  func.func @transform_4(%arg0: i32, %arg1: i32) -> (i32, i32, i32, i32) {
    %c0_i32 = arith.constant 0 : i32
    %c0_i32_0 = arith.constant 0 : i32
    %c0_i32_1 = arith.constant 0 : i32
    return %arg0, %c0_i32, %arg1, %c0_i32_0 : i32, i32, i32, i32
  }
}

module attributes {stable_mosaic.version = 11 : i64} {
  func.func @_attn_out_res_ln_kernel(%arg0: i32, %arg1: i32, %arg2: i32, %arg3: memref<1x1x8x16xbf16, #tpu.memory_space<vmem>>, %arg4: memref<1x16x32xbf16, #tpu.memory_space<vmem>>, %arg5: memref<1x32xbf16, #tpu.memory_space<vmem>>, %arg6: memref<1x8x32xbf16, #tpu.memory_space<vmem>>, %arg7: memref<1x32xbf16, #tpu.memory_space<vmem>>, %arg8: memref<1x32xbf16, #tpu.memory_space<vmem>>, %arg9: memref<1x8x32xbf16, #tpu.memory_space<vmem>>, %arg10: memref<8x32xf32, #tpu.memory_space<vmem>>) attributes {dimension_semantics = [#tpu.dimension_semantics<parallel>, #tpu.dimension_semantics<parallel>, #tpu.dimension_semantics<arbitrary>], iteration_bounds = array<i64: 2, 1, 2>, scalar_prefetch = 0 : i64, scratch_operands = 1 : i64, tpu.core_type = #tpu.core_type<tc>, window_params = [{transform_indices = @transform_0, window_bounds = array<i64: 1, 1, 8, 16>}, {transform_indices = @transform_1, window_bounds = array<i64: 1, 16, 32>}, {pipeline_mode = #tpu.pipeline_mode<synchronous>, transform_indices = @transform_2, window_bounds = array<i64: 1, 32>}, {transform_indices = @transform_3, window_bounds = array<i64: 1, 8, 32>}, {pipeline_mode = #tpu.pipeline_mode<synchronous>, transform_indices = @transform_4, window_bounds = array<i64: 1, 32>}, {pipeline_mode = #tpu.pipeline_mode<synchronous>, transform_indices = @transform_5, window_bounds = array<i64: 1, 32>}, {transform_indices = @transform_6, window_bounds = array<i64: 1, 8, 32>}]} {
    %c0_i32 = arith.constant 0 : i32
    %0 = arith.cmpi eq, %arg2, %c0_i32 : i32
    %1 = arith.extui %0 : i1 to i32
    %c0_i32_0 = arith.constant 0 : i32
    %2 = arith.cmpi ne, %1, %c0_i32_0 : i32
    scf.if %2 {
      %cst_12 = arith.constant 0.000000e+00 : f32
      %14 = vector.broadcast %cst_12 : f32 to vector<8x32xf32>
      %c0_13 = arith.constant 0 : index
      %c0_14 = arith.constant 0 : index
      %15 = vector.load %arg10[%c0_13, %c0_14] : memref<8x32xf32, #tpu.memory_space<vmem>>, vector<8x32xf32>
      tpu.vector_store %arg10[%c0_13, %c0_14], %14 {strides = array<i32>} : memref<8x32xf32, #tpu.memory_space<vmem>>, vector<8x32xf32>,
    } else {
    }
    %c0 = arith.constant 0 : index
    %c0_1 = arith.constant 0 : index
    %3 = vector.load %arg10[%c0, %c0_1] : memref<8x32xf32, #tpu.memory_space<vmem>>, vector<8x32xf32>
    %c0_2 = arith.constant 0 : index
    %c0_3 = arith.constant 0 : index
    %c0_4 = arith.constant 0 : index
    %c0_5 = arith.constant 0 : index
    %4 = vector.load %arg3[%c0_2, %c0_3, %c0_4, %c0_5] : memref<1x1x8x16xbf16, #tpu.memory_space<vmem>>, vector<1x1x8x16xbf16>
    %5 = vector.shape_cast %4 : vector<1x1x8x16xbf16> to vector<8x16xbf16>
    %c0_6 = arith.constant 0 : index
    %c0_7 = arith.constant 0 : index
    %c0_8 = arith.constant 0 : index
    %6 = vector.load %arg4[%c0_6, %c0_7, %c0_8] : memref<1x16x32xbf16, #tpu.memory_space<vmem>>, vector<1x16x32xbf16>
    %7 = vector.shape_cast %6 : vector<1x16x32xbf16> to vector<16x32xbf16>
    %cst = arith.constant dense<0.000000e+00> : vector<8x32xf32>
    %8 = tpu.matmul %5, %7, %cst {dimension_numbers = #tpu.dot_dimension_numbers<[1], [0], [0], [1], [0, 0, 1, 1], [], []>} : vector<8x16xbf16>, vector<16x32xbf16>, vector<8x32xf32> -> vector<8x32xf32>
    %9 = arith.addf %3, %8 : vector<8x32xf32>
    %c0_9 = arith.constant 0 : index
    %c0_10 = arith.constant 0 : index
    %10 = vector.load %arg10[%c0_9, %c0_10] : memref<8x32xf32, #tpu.memory_space<vmem>>, vector<8x32xf32>
    tpu.vector_store %arg10[%c0_9, %c0_10], %9 {strides = array<i32>} : memref<8x32xf32, #tpu.memory_space<vmem>>, vector<8x32xf32>,
    %c1_i32 = arith.constant 1 : i32
    %11 = arith.cmpi eq, %arg2, %c1_i32 : i32
    %12 = arith.extui %11 : i1 to i32
    %c0_i32_11 = arith.constant 0 : i32
    %13 = arith.cmpi ne, %12, %c0_i32_11 : i32
    scf.if %13 {
      %c0_12 = arith.constant 0 : index
      %c0_13 = arith.constant 0 : index
      %14 = vector.load %arg10[%c0_12, %c0_13] : memref<8x32xf32, #tpu.memory_space<vmem>>, vector<8x32xf32>
      %c0_14 = arith.constant 0 : index
      %c0_15 = arith.constant 0 : index
      %15 = vector.load %arg5[%c0_14, %c0_15] : memref<1x32xbf16, #tpu.memory_space<vmem>>, vector<1x32xbf16>
      %16 = arith.extf %15 : vector<1x32xbf16> to vector<1x32xf32>
      %17 = vector.broadcast %16 : vector<1x32xf32> to vector<8x32xf32>
      %18 = arith.addf %14, %17 : vector<8x32xf32>
      %c0_16 = arith.constant 0 : index
      %c0_17 = arith.constant 0 : index
      %c0_18 = arith.constant 0 : index
      %19 = vector.load %arg6[%c0_16, %c0_17, %c0_18] : memref<1x8x32xbf16, #tpu.memory_space<vmem>>, vector<1x8x32xbf16>
      %20 = vector.shape_cast %19 : vector<1x8x32xbf16> to vector<8x32xbf16>
      %21 = arith.extf %20 : vector<8x32xbf16> to vector<8x32xf32>
      %22 = arith.addf %18, %21 : vector<8x32xf32>
      %cst_19 = arith.constant dense<0.000000e+00> : vector<8xf32>
      %23 = vector.multi_reduction <add>, %22, %cst_19 [1] : vector<8x32xf32> to vector<8xf32>
      %24 = vector.shape_cast %23 : vector<8xf32> to vector<8x1xf32>
      %cst_20 = arith.constant 3.200000e+01 : f32
      %25 = vector.broadcast %cst_20 : f32 to vector<8x1xf32>
      %26 = arith.divf %24, %25 : vector<8x1xf32>
      %27 = vector.broadcast %26 : vector<8x1xf32> to vector<8x32xf32>
      %28 = arith.subf %22, %27 : vector<8x32xf32>
      %29 = arith.mulf %28, %28 : vector<8x32xf32>
      %cst_21 = arith.constant dense<0.000000e+00> : vector<8xf32>
      %30 = vector.multi_reduction <add>, %29, %cst_21 [1] : vector<8x32xf32> to vector<8xf32>
      %31 = vector.shape_cast %30 : vector<8xf32> to vector<8x1xf32>
      %cst_22 = arith.constant 3.200000e+01 : f32
      %32 = vector.broadcast %cst_22 : f32 to vector<8x1xf32>
      %33 = arith.divf %31, %32 : vector<8x1xf32>
      %34 = vector.broadcast %26 : vector<8x1xf32> to vector<8x32xf32>
      %35 = arith.subf %22, %34 : vector<8x32xf32>
      %cst_23 = arith.constant 9.99999996E-13 : f32
      %36 = vector.broadcast %cst_23 : f32 to vector<8x1xf32>
      %37 = arith.addf %33, %36 : vector<8x1xf32>
      %38 = math.rsqrt %37 : vector<8x1xf32>
      %39 = vector.broadcast %38 : vector<8x1xf32> to vector<8x32xf32>
      %40 = arith.mulf %35, %39 : vector<8x32xf32>
      %c0_24 = arith.constant 0 : index
      %c0_25 = arith.constant 0 : index
      %41 = vector.load %arg7[%c0_24, %c0_25] : memref<1x32xbf16, #tpu.memory_space<vmem>>, vector<1x32xbf16>
      %42 = arith.extf %41 : vector<1x32xbf16> to vector<1x32xf32>
      %43 = vector.broadcast %42 : vector<1x32xf32> to vector<8x32xf32>
      %44 = arith.mulf %40, %43 : vector<8x32xf32>
      %c0_26 = arith.constant 0 : index
      %c0_27 = arith.constant 0 : index
      %45 = vector.load %arg8[%c0_26, %c0_27] : memref<1x32xbf16, #tpu.memory_space<vmem>>, vector<1x32xbf16>
      %46 = arith.extf %45 : vector<1x32xbf16> to vector<1x32xf32>
      %47 = vector.broadcast %46 : vector<1x32xf32> to vector<8x32xf32>
      %48 = arith.addf %44, %47 : vector<8x32xf32>
      %49 = arith.truncf %48 : vector<8x32xf32> to vector<8x32xbf16>
      %c0_28 = arith.constant 0 : index
      %c0_29 = arith.constant 0 : index
      %c0_30 = arith.constant 0 : index
      %50 = vector.load %arg9[%c0_28, %c0_29, %c0_30] : memref<1x8x32xbf16, #tpu.memory_space<vmem>>, vector<1x8x32xbf16>
      %51 = vector.shape_cast %50 : vector<1x8x32xbf16> to vector<8x32xbf16>
      %52 = vector.shape_cast %49 : vector<8x32xbf16> to vector<1x8x32xbf16>
      tpu.vector_store %arg9[%c0_28, %c0_29, %c0_30], %52 {strides = array<i32>} : memref<1x8x32xbf16, #tpu.memory_space<vmem>>, vector<1x8x32xbf16>,
    } else {
    }
    return
  }
  func.func @transform_0(%arg0: i32, %arg1: i32, %arg2: i32) -> (i32, i32, i32, i32) {
    %c0_i32 = arith.constant 0 : i32
    %c0_i32_0 = arith.constant 0 : i32
    return %arg0, %arg2, %arg1, %c0_i32 : i32, i32, i32, i32
  }
  func.func @transform_1(%arg0: i32, %arg1: i32, %arg2: i32) -> (i32, i32, i32) {
    %c0_i32 = arith.constant 0 : i32
    %c0_i32_0 = arith.constant 0 : i32
    %c0_i32_1 = arith.constant 0 : i32
    return %arg2, %c0_i32, %c0_i32_0 : i32, i32, i32
  }
  func.func @transform_2(%arg0: i32, %arg1: i32, %arg2: i32) -> (i32, i32) {
    %c0_i32 = arith.constant 0 : i32
    %c0_i32_0 = arith.constant 0 : i32
    %c0_i32_1 = arith.constant 0 : i32
    return %c0_i32, %c0_i32_0 : i32, i32
  }
  func.func @transform_3(%arg0: i32, %arg1: i32, %arg2: i32) -> (i32, i32, i32) {
    %c0_i32 = arith.constant 0 : i32
    %c0_i32_0 = arith.constant 0 : i32
    return %arg0, %arg1, %c0_i32 : i32, i32, i32
  }
  func.func @transform_4(%arg0: i32, %arg1: i32, %arg2: i32) -> (i32, i32) {
    %c0_i32 = arith.constant 0 : i32
    %c0_i32_0 = arith.constant 0 : i32
    %c0_i32_1 = arith.constant 0 : i32
    return %c0_i32, %c0_i32_0 : i32, i32
  }
  func.func @transform_5(%arg0: i32, %arg1: i32, %arg2: i32) -> (i32, i32) {
    %c0_i32 = arith.constant 0 : i32
    %c0_i32_0 = arith.constant 0 : i32
    %c0_i32_1 = arith.constant 0 : i32
    return %c0_i32, %c0_i32_0 : i32, i32
  }
  func.func @transform_6(%arg0: i32, %arg1: i32, %arg2: i32) -> (i32, i32, i32) {
    %c0_i32 = arith.constant 0 : i32
    %c0_i32_0 = arith.constant 0 : i32
    return %arg0, %arg1, %c0_i32 : i32, i32, i32
  }
}

module attributes {stable_mosaic.version = 11 : i64} {
  func.func @_dense_kernel(%arg0: i32, %arg1: memref<16x32xbf16, #tpu.memory_space<vmem>>, %arg2: memref<32x64xbf16, #tpu.memory_space<vmem>>, %arg3: memref<1x64xbf16, #tpu.memory_space<vmem>>, %arg4: memref<16x64xbf16, #tpu.memory_space<vmem>>) attributes {dimension_semantics = [#tpu.dimension_semantics<parallel>], iteration_bounds = array<i64: 1>, scalar_prefetch = 0 : i64, scratch_operands = 0 : i64, tpu.core_type = #tpu.core_type<tc>, window_params = [{transform_indices = @transform_0, window_bounds = array<i64: 16, 32>}, {pipeline_mode = #tpu.pipeline_mode<synchronous>, transform_indices = @transform_1, window_bounds = array<i64: 32, 64>}, {pipeline_mode = #tpu.pipeline_mode<synchronous>, transform_indices = @transform_2, window_bounds = array<i64: 1, 64>}, {transform_indices = @transform_3, window_bounds = array<i64: 16, 64>}]} {
    %c0 = arith.constant 0 : index
    %c0_0 = arith.constant 0 : index
    %0 = vector.load %arg1[%c0, %c0_0] : memref<16x32xbf16, #tpu.memory_space<vmem>>, vector<16x32xbf16>
    %c0_1 = arith.constant 0 : index
    %c0_2 = arith.constant 0 : index
    %1 = vector.load %arg2[%c0_1, %c0_2] : memref<32x64xbf16, #tpu.memory_space<vmem>>, vector<32x64xbf16>
    %cst = arith.constant dense<0.000000e+00> : vector<16x64xf32>
    %2 = tpu.matmul %0, %1, %cst {dimension_numbers = #tpu.dot_dimension_numbers<[1], [0], [0], [1], [0, 0, 1, 1], [], []>} : vector<16x32xbf16>, vector<32x64xbf16>, vector<16x64xf32> -> vector<16x64xf32>
    %c0_3 = arith.constant 0 : index
    %c0_4 = arith.constant 0 : index
    %3 = vector.load %arg3[%c0_3, %c0_4] : memref<1x64xbf16, #tpu.memory_space<vmem>>, vector<1x64xbf16>
    %4 = arith.extf %3 : vector<1x64xbf16> to vector<1x64xf32>
    %5 = vector.broadcast %4 : vector<1x64xf32> to vector<16x64xf32>
    %6 = arith.addf %2, %5 : vector<16x64xf32>
    %cst_5 = arith.constant 5.000000e-01 : f32
    %7 = vector.broadcast %cst_5 : f32 to vector<16x64xf32>
    %8 = arith.mulf %7, %6 : vector<16x64xf32>
    %cst_6 = arith.constant 4.471500e-02 : f32
    %9 = vector.broadcast %cst_6 : f32 to vector<16x64xf32>
    %10 = arith.mulf %9, %6 : vector<16x64xf32>
    %11 = arith.mulf %10, %6 : vector<16x64xf32>
    %12 = arith.mulf %11, %6 : vector<16x64xf32>
    %13 = arith.addf %6, %12 : vector<16x64xf32>
    %cst_7 = arith.constant 0.797884583 : f32
    %14 = vector.broadcast %cst_7 : f32 to vector<16x64xf32>
    %15 = arith.mulf %14, %13 : vector<16x64xf32>
    %16 = math.tanh %15 : vector<16x64xf32>
    %cst_8 = arith.constant 1.000000e+00 : f32
    %17 = vector.broadcast %cst_8 : f32 to vector<16x64xf32>
    %18 = arith.addf %17, %16 : vector<16x64xf32>
    %19 = arith.mulf %8, %18 : vector<16x64xf32>
    %20 = arith.truncf %19 : vector<16x64xf32> to vector<16x64xbf16>
    %c0_9 = arith.constant 0 : index
    %c0_10 = arith.constant 0 : index
    %21 = vector.load %arg4[%c0_9, %c0_10] : memref<16x64xbf16, #tpu.memory_space<vmem>>, vector<16x64xbf16>
    tpu.vector_store %arg4[%c0_9, %c0_10], %20 {strides = array<i32>} : memref<16x64xbf16, #tpu.memory_space<vmem>>, vector<16x64xbf16>,
    return
  }
  func.func @transform_0(%arg0: i32) -> (i32, i32) {
    %c0_i32 = arith.constant 0 : i32
    %c0_i32_0 = arith.constant 0 : i32
    return %arg0, %c0_i32 : i32, i32
  }
  func.func @transform_1(%arg0: i32) -> (i32, i32) {
    %c0_i32 = arith.constant 0 : i32
    %c0_i32_0 = arith.constant 0 : i32
    %c0_i32_1 = arith.constant 0 : i32
    return %c0_i32, %c0_i32_0 : i32, i32
  }
  func.func @transform_2(%arg0: i32) -> (i32, i32) {
    %c0_i32 = arith.constant 0 : i32
    %c0_i32_0 = arith.constant 0 : i32
    %c0_i32_1 = arith.constant 0 : i32
    return %c0_i32, %c0_i32_0 : i32, i32
  }
  func.func @transform_3(%arg0: i32) -> (i32, i32) {
    %c0_i32 = arith.constant 0 : i32
    %c0_i32_0 = arith.constant 0 : i32
    return %arg0, %c0_i32 : i32, i32
  }
}

module attributes {stable_mosaic.version = 11 : i64} {
  func.func @_dense_res_ln_kernel(%arg0: i32, %arg1: memref<16x64xbf16, #tpu.memory_space<vmem>>, %arg2: memref<64x32xbf16, #tpu.memory_space<vmem>>, %arg3: memref<1x32xbf16, #tpu.memory_space<vmem>>, %arg4: memref<16x32xbf16, #tpu.memory_space<vmem>>, %arg5: memref<1x32xbf16, #tpu.memory_space<vmem>>, %arg6: memref<1x32xbf16, #tpu.memory_space<vmem>>, %arg7: memref<16x32xbf16, #tpu.memory_space<vmem>>) attributes {dimension_semantics = [#tpu.dimension_semantics<parallel>], iteration_bounds = array<i64: 1>, scalar_prefetch = 0 : i64, scratch_operands = 0 : i64, tpu.core_type = #tpu.core_type<tc>, window_params = [{transform_indices = @transform_0, window_bounds = array<i64: 16, 64>}, {pipeline_mode = #tpu.pipeline_mode<synchronous>, transform_indices = @transform_1, window_bounds = array<i64: 64, 32>}, {pipeline_mode = #tpu.pipeline_mode<synchronous>, transform_indices = @transform_2, window_bounds = array<i64: 1, 32>}, {transform_indices = @transform_3, window_bounds = array<i64: 16, 32>}, {pipeline_mode = #tpu.pipeline_mode<synchronous>, transform_indices = @transform_4, window_bounds = array<i64: 1, 32>}, {pipeline_mode = #tpu.pipeline_mode<synchronous>, transform_indices = @transform_5, window_bounds = array<i64: 1, 32>}, {transform_indices = @transform_6, window_bounds = array<i64: 16, 32>}]} {
    %c0 = arith.constant 0 : index
    %c0_0 = arith.constant 0 : index
    %0 = vector.load %arg1[%c0, %c0_0] : memref<16x64xbf16, #tpu.memory_space<vmem>>, vector<16x64xbf16>
    %c0_1 = arith.constant 0 : index
    %c0_2 = arith.constant 0 : index
    %1 = vector.load %arg2[%c0_1, %c0_2] : memref<64x32xbf16, #tpu.memory_space<vmem>>, vector<64x32xbf16>
    %cst = arith.constant dense<0.000000e+00> : vector<16x32xf32>
    %2 = tpu.matmul %0, %1, %cst {dimension_numbers = #tpu.dot_dimension_numbers<[1], [0], [0], [1], [0, 0, 1, 1], [], []>} : vector<16x64xbf16>, vector<64x32xbf16>, vector<16x32xf32> -> vector<16x32xf32>
    %c0_3 = arith.constant 0 : index
    %c0_4 = arith.constant 0 : index
    %3 = vector.load %arg3[%c0_3, %c0_4] : memref<1x32xbf16, #tpu.memory_space<vmem>>, vector<1x32xbf16>
    %4 = arith.extf %3 : vector<1x32xbf16> to vector<1x32xf32>
    %5 = vector.broadcast %4 : vector<1x32xf32> to vector<16x32xf32>
    %6 = arith.addf %2, %5 : vector<16x32xf32>
    %c0_5 = arith.constant 0 : index
    %c0_6 = arith.constant 0 : index
    %7 = vector.load %arg4[%c0_5, %c0_6] : memref<16x32xbf16, #tpu.memory_space<vmem>>, vector<16x32xbf16>
    %8 = arith.extf %7 : vector<16x32xbf16> to vector<16x32xf32>
    %9 = arith.addf %6, %8 : vector<16x32xf32>
    %cst_7 = arith.constant dense<0.000000e+00> : vector<16xf32>
    %10 = vector.multi_reduction <add>, %9, %cst_7 [1] : vector<16x32xf32> to vector<16xf32>
    %11 = vector.shape_cast %10 : vector<16xf32> to vector<16x1xf32>
    %cst_8 = arith.constant 3.200000e+01 : f32
    %12 = vector.broadcast %cst_8 : f32 to vector<16x1xf32>
    %13 = arith.divf %11, %12 : vector<16x1xf32>
    %14 = vector.broadcast %13 : vector<16x1xf32> to vector<16x32xf32>
    %15 = arith.subf %9, %14 : vector<16x32xf32>
    %16 = arith.mulf %15, %15 : vector<16x32xf32>
    %cst_9 = arith.constant dense<0.000000e+00> : vector<16xf32>
    %17 = vector.multi_reduction <add>, %16, %cst_9 [1] : vector<16x32xf32> to vector<16xf32>
    %18 = vector.shape_cast %17 : vector<16xf32> to vector<16x1xf32>
    %cst_10 = arith.constant 3.200000e+01 : f32
    %19 = vector.broadcast %cst_10 : f32 to vector<16x1xf32>
    %20 = arith.divf %18, %19 : vector<16x1xf32>
    %21 = vector.broadcast %13 : vector<16x1xf32> to vector<16x32xf32>
    %22 = arith.subf %9, %21 : vector<16x32xf32>
    %cst_11 = arith.constant 9.99999996E-13 : f32
    %23 = vector.broadcast %cst_11 : f32 to vector<16x1xf32>
    %24 = arith.addf %20, %23 : vector<16x1xf32>
    %25 = math.rsqrt %24 : vector<16x1xf32>
    %26 = vector.broadcast %25 : vector<16x1xf32> to vector<16x32xf32>
    %27 = arith.mulf %22, %26 : vector<16x32xf32>
    %c0_12 = arith.constant 0 : index
    %c0_13 = arith.constant 0 : index
    %28 = vector.load %arg5[%c0_12, %c0_13] : memref<1x32xbf16, #tpu.memory_space<vmem>>, vector<1x32xbf16>
    %29 = arith.extf %28 : vector<1x32xbf16> to vector<1x32xf32>
    %30 = vector.broadcast %29 : vector<1x32xf32> to vector<16x32xf32>
    %31 = arith.mulf %27, %30 : vector<16x32xf32>
    %c0_14 = arith.constant 0 : index
    %c0_15 = arith.constant 0 : index
    %32 = vector.load %arg6[%c0_14, %c0_15] : memref<1x32xbf16, #tpu.memory_space<vmem>>, vector<1x32xbf16>
    %33 = arith.extf %32 : vector<1x32xbf16> to vector<1x32xf32>
    %34 = vector.broadcast %33 : vector<1x32xf32> to vector<16x32xf32>
    %35 = arith.addf %31, %34 : vector<16x32xf32>
    %36 = arith.truncf %35 : vector<16x32xf32> to vector<16x32xbf16>
    %c0_16 = arith.constant 0 : index
    %c0_17 = arith.constant 0 : index
    %37 = vector.load %arg7[%c0_16, %c0_17] : memref<16x32xbf16, #tpu.memory_space<vmem>>, vector<16x32xbf16>
    tpu.vector_store %arg7[%c0_16, %c0_17], %36 {strides = array<i32>} : memref<16x32xbf16, #tpu.memory_space<vmem>>, vector<16x32xbf16>,
    return
  }
  func.func @transform_0(%arg0: i32) -> (i32, i32) {
    %c0_i32 = arith.constant 0 : i32
    %c0_i32_0 = arith.constant 0 : i32
    return %arg0, %c0_i32 : i32, i32
  }
  func.func @transform_1(%arg0: i32) -> (i32, i32) {
    %c0_i32 = arith.constant 0 : i32
    %c0_i32_0 = arith.constant 0 : i32
    %c0_i32_1 = arith.constant 0 : i32
    return %c0_i32, %c0_i32_0 : i32, i32
  }
  func.func @transform_2(%arg0: i32) -> (i32, i32) {
    %c0_i32 = arith.constant 0 : i32
    %c0_i32_0 = arith.constant 0 : i32
    %c0_i32_1 = arith.constant 0 : i32
    return %c0_i32, %c0_i32_0 : i32, i32
  }
  func.func @transform_3(%arg0: i32) -> (i32, i32) {
    %c0_i32 = arith.constant 0 : i32
    %c0_i32_0 = arith.constant 0 : i32
    return %arg0, %c0_i32 : i32, i32
  }
  func.func @transform_4(%arg0: i32) -> (i32, i32) {
    %c0_i32 = arith.constant 0 : i32
    %c0_i32_0 = arith.constant 0 : i32
    %c0_i32_1 = arith.constant 0 : i32
    return %c0_i32, %c0_i32_0 : i32, i32
  }
  func.func @transform_5(%arg0: i32) -> (i32, i32) {
    %c0_i32 = arith.constant 0 : i32
    %c0_i32_0 = arith.constant 0 : i32
    %c0_i32_1 = arith.constant 0 : i32
    return %c0_i32, %c0_i32_0 : i32, i32
  }
  func.func @transform_6(%arg0: i32) -> (i32, i32) {
    %c0_i32 = arith.constant 0 : i32
    %c0_i32_0 = arith.constant 0 : i32
    return %arg0, %c0_i32 : i32, i32
  }
}

module attributes {stable_mosaic.version = 11 : i64} {
  func.func @_head_kernel(%arg0: i32, %arg1: memref<2x32xbf16, #tpu.memory_space<vmem>>, %arg2: memref<32x32xbf16, #tpu.memory_space<vmem>>, %arg3: memref<1x32xbf16, #tpu.memory_space<vmem>>, %arg4: memref<32x3xbf16, #tpu.memory_space<vmem>>, %arg5: memref<1x3xbf16, #tpu.memory_space<vmem>>, %arg6: memref<2x3xf32, #tpu.memory_space<vmem>>, %arg7: memref<2x3xf32, #tpu.memory_space<vmem>>, %arg8: memref<1x1xf32, #tpu.memory_space<vmem>>) attributes {dimension_semantics = [#tpu.dimension_semantics<arbitrary>], iteration_bounds = array<i64: 1>, scalar_prefetch = 0 : i64, scratch_operands = 0 : i64, tpu.core_type = #tpu.core_type<tc>, window_params = [{pipeline_mode = #tpu.pipeline_mode<synchronous>, transform_indices = @transform_0, window_bounds = array<i64: 2, 32>}, {pipeline_mode = #tpu.pipeline_mode<synchronous>, transform_indices = @transform_1, window_bounds = array<i64: 32, 32>}, {pipeline_mode = #tpu.pipeline_mode<synchronous>, transform_indices = @transform_2, window_bounds = array<i64: 1, 32>}, {pipeline_mode = #tpu.pipeline_mode<synchronous>, transform_indices = @transform_3, window_bounds = array<i64: 32, 3>}, {pipeline_mode = #tpu.pipeline_mode<synchronous>, transform_indices = @transform_4, window_bounds = array<i64: 1, 3>}, {pipeline_mode = #tpu.pipeline_mode<synchronous>, transform_indices = @transform_5, window_bounds = array<i64: 2, 3>}, {pipeline_mode = #tpu.pipeline_mode<synchronous>, transform_indices = @transform_6, window_bounds = array<i64: 2, 3>}, {pipeline_mode = #tpu.pipeline_mode<synchronous>, transform_indices = @transform_7, window_bounds = array<i64: 1, 1>}]} {
    %c0 = arith.constant 0 : index
    %c0_0 = arith.constant 0 : index
    %0 = vector.load %arg1[%c0, %c0_0] : memref<2x32xbf16, #tpu.memory_space<vmem>>, vector<2x32xbf16>
    %c0_1 = arith.constant 0 : index
    %c0_2 = arith.constant 0 : index
    %1 = vector.load %arg2[%c0_1, %c0_2] : memref<32x32xbf16, #tpu.memory_space<vmem>>, vector<32x32xbf16>
    %cst = arith.constant dense<0.000000e+00> : vector<2x32xf32>
    %2 = tpu.matmul %0, %1, %cst {dimension_numbers = #tpu.dot_dimension_numbers<[1], [0], [0], [1], [0, 0, 1, 1], [], []>} : vector<2x32xbf16>, vector<32x32xbf16>, vector<2x32xf32> -> vector<2x32xf32>
    %c0_3 = arith.constant 0 : index
    %c0_4 = arith.constant 0 : index
    %3 = vector.load %arg3[%c0_3, %c0_4] : memref<1x32xbf16, #tpu.memory_space<vmem>>, vector<1x32xbf16>
    %4 = arith.extf %3 : vector<1x32xbf16> to vector<1x32xf32>
    %5 = vector.broadcast %4 : vector<1x32xf32> to vector<2x32xf32>
    %6 = arith.addf %2, %5 : vector<2x32xf32>
    %7 = math.tanh %6 : vector<2x32xf32>
    %8 = arith.truncf %7 : vector<2x32xf32> to vector<2x32xbf16>
    %c0_5 = arith.constant 0 : index
    %c0_6 = arith.constant 0 : index
    %9 = vector.load %arg4[%c0_5, %c0_6] : memref<32x3xbf16, #tpu.memory_space<vmem>>, vector<32x3xbf16>
    %cst_7 = arith.constant dense<0.000000e+00> : vector<2x3xf32>
    %10 = tpu.matmul %8, %9, %cst_7 {dimension_numbers = #tpu.dot_dimension_numbers<[1], [0], [0], [1], [0, 0, 1, 1], [], []>} : vector<2x32xbf16>, vector<32x3xbf16>, vector<2x3xf32> -> vector<2x3xf32>
    %c0_8 = arith.constant 0 : index
    %c0_9 = arith.constant 0 : index
    %11 = vector.load %arg5[%c0_8, %c0_9] : memref<1x3xbf16, #tpu.memory_space<vmem>>, vector<1x3xbf16>
    %12 = arith.extf %11 : vector<1x3xbf16> to vector<1x3xf32>
    %13 = vector.broadcast %12 : vector<1x3xf32> to vector<2x3xf32>
    %14 = arith.addf %10, %13 : vector<2x3xf32>
    %c0_10 = arith.constant 0 : index
    %c0_11 = arith.constant 0 : index
    %15 = vector.load %arg7[%c0_10, %c0_11] : memref<2x3xf32, #tpu.memory_space<vmem>>, vector<2x3xf32>
    tpu.vector_store %arg7[%c0_10, %c0_11], %14 {strides = array<i32>} : memref<2x3xf32, #tpu.memory_space<vmem>>, vector<2x3xf32>,
    %cst_12 = arith.constant dense<0xFF800000> : vector<2xf32>
    %16 = vector.multi_reduction <maximumf>, %14, %cst_12 [1] : vector<2x3xf32> to vector<2xf32>
    %17 = vector.shape_cast %16 : vector<2xf32> to vector<2x1xf32>
    %18 = vector.broadcast %17 : vector<2x1xf32> to vector<2x3xf32>
    %19 = arith.subf %14, %18 : vector<2x3xf32>
    %20 = math.exp %19 : vector<2x3xf32>
    %cst_13 = arith.constant dense<0.000000e+00> : vector<2xf32>
    %21 = vector.multi_reduction <add>, %20, %cst_13 [1] : vector<2x3xf32> to vector<2xf32>
    %22 = vector.shape_cast %21 : vector<2xf32> to vector<2x1xf32>
    %23 = math.log %22 : vector<2x1xf32>
    %c0_14 = arith.constant 0 : index
    %c0_15 = arith.constant 0 : index
    %24 = vector.load %arg6[%c0_14, %c0_15] : memref<2x3xf32, #tpu.memory_space<vmem>>, vector<2x3xf32>
    %25 = vector.broadcast %23 : vector<2x1xf32> to vector<2x3xf32>
    %26 = arith.subf %19, %25 : vector<2x3xf32>
    %27 = arith.mulf %24, %26 : vector<2x3xf32>
    %28 = vector.shape_cast %27 : vector<2x3xf32> to vector<1x2x3xf32>
    %cst_16 = arith.constant dense<0.000000e+00> : vector<1xf32>
    %29 = vector.multi_reduction <add>, %28, %cst_16 [1, 2] : vector<1x2x3xf32> to vector<1xf32>
    %30 = vector.shape_cast %29 : vector<1xf32> to vector<1x1x1xf32>
    %31 = vector.extract %30[0, 0, 0] : f32 from vector<1x1x1xf32>
    %cst_17 = arith.constant 0.000000e+00 : f32
    %32 = arith.subf %cst_17, %31 : f32
    %cst_18 = arith.constant 2.000000e+00 : f32
    %33 = arith.divf %32, %cst_18 : f32
    %34 = vector.broadcast %33 : f32 to vector<1x1xf32>
    %c0_19 = arith.constant 0 : index
    %c0_20 = arith.constant 0 : index
    %35 = vector.load %arg8[%c0_19, %c0_20] : memref<1x1xf32, #tpu.memory_space<vmem>>, vector<1x1xf32>
    tpu.vector_store %arg8[%c0_19, %c0_20], %34 {strides = array<i32>} : memref<1x1xf32, #tpu.memory_space<vmem>>, vector<1x1xf32>,
    return
  }
  func.func @transform_0(%arg0: i32) -> (i32, i32) {
    %c0_i32 = arith.constant 0 : i32
    %c0_i32_0 = arith.constant 0 : i32
    %c0_i32_1 = arith.constant 0 : i32
    return %c0_i32, %c0_i32_0 : i32, i32
  }
  func.func @transform_1(%arg0: i32) -> (i32, i32) {
    %c0_i32 = arith.constant 0 : i32
    %c0_i32_0 = arith.constant 0 : i32
    %c0_i32_1 = arith.constant 0 : i32
    return %c0_i32, %c0_i32_0 : i32, i32
  }
  func.func @transform_2(%arg0: i32) -> (i32, i32) {
    %c0_i32 = arith.constant 0 : i32
    %c0_i32_0 = arith.constant 0 : i32
    %c0_i32_1 = arith.constant 0 : i32
    return %c0_i32, %c0_i32_0 : i32, i32
  }
  func.func @transform_3(%arg0: i32) -> (i32, i32) {
    %c0_i32 = arith.constant 0 : i32
    %c0_i32_0 = arith.constant 0 : i32
    %c0_i32_1 = arith.constant 0 : i32
    return %c0_i32, %c0_i32_0 : i32, i32
  }
  func.func @transform_4(%arg0: i32) -> (i32, i32) {
    %c0_i32 = arith.constant 0 : i32
    %c0_i32_0 = arith.constant 0 : i32
    %c0_i32_1 = arith.constant 0 : i32
    return %c0_i32, %c0_i32_0 : i32, i32
  }
  func.func @transform_5(%arg0: i32) -> (i32, i32) {
    %c0_i32 = arith.constant 0 : i32
    %c0_i32_0 = arith.constant 0 : i32
    %c0_i32_1 = arith.constant 0 : i32
    return %c0_i32, %c0_i32_0 : i32, i32
  }
  func.func @transform_6(%arg0: i32) -> (i32, i32) {
    %c0_i32 = arith.constant 0 : i32
    %c0_i32_0 = arith.constant 0 : i32
    %c0_i32_1 = arith.constant 0 : i32
    return %c0_i32, %c0_i32_0 : i32, i32
  }
  func.func @transform_7(%arg0: i32) -> (i32, i32) {
    %c0_i32 = arith.constant 0 : i32
    %c0_i32_0 = arith.constant 0 : i32
    %c0_i32_1 = arith.constant 0 : i32
    return %c0_i32, %c0_i32_0 : i32, i32
  }
}

</mosaic_0001>

<llo_original>
// kernel: _forward.14
$region0: #{_forward.14}
  #allocation0 [shape = 'u32[]', space=smem, size = 0x4, offset = 0x4, fixed_abs, tag = 'smem constant byte address 0x4 - core index']
  #allocation1 [shape = 'u32[72,128]{1,0:T(1,128)}', space=vmem, size = 0x9000, scoped, tag = 'internal scratch']
  %s0 = inlined_call_operand.vmem [shape: bf16[2,2,8,16], index: 0, kind: input, shape index: {}]
  %s1 = inlined_call_operand.vmem [shape: bf16[2,2,8,16], index: 1, kind: input, shape index: {}]
  %s2 = inlined_call_operand.vmem [shape: bf16[2,2,8,16], index: 2, kind: input, shape index: {}]
  %s3 = inlined_call_operand.vmem [shape: f32[2,1,8], index: 3, kind: input, shape index: {}]
  %s4 = inlined_call_operand.vmem [shape: bf16[2,2,8,16], index: 4, kind: output, shape index: {}]
  %s5 = sld [smem:[#allocation0]]
  $region49: #{_forward.14} parent=0
    _
  %s7 = ssub.s32 1, %s5
  %s8 = scalar_select 0, %s7, %s5
  loop: start=0, step=1, limit=4
  $region2: #{_forward.14} parent=0 // loop_pre_header
    _
  $region3: #{_forward.14} parent=0 // loop_header
    %s10 = sphi 0, %s14
    %p11 = scmp.ge.s32.totalorder %s10, 4
    %s17 = sphi 0, %s29
    %s18 = sphi 0, %s25
    %s19 = sphi 0, %s17
    %s20 = sphi 0, %s18
    %s21 = sphi 0, %s19
    %s22 = sphi 0, %s20
    %s34 = sphi 0, %s36
    %s37 = sphi 0, %s34
    %s38 = sphi 0, %s37
    %s54 = sphi 0, %s38
    %s60 = sphi 0, %s62
    %s63 = sphi 0, %s60
    %s64 = sphi 0, %s63
    %s80 = sphi 0, %s64
    %s86 = sphi 0, %s88
    %s89 = sphi 0, %s86
    %s90 = sphi 0, %s89
    %s106 = sphi 0, %s90
    %s112 = sphi 0, %s114
    %s115 = sphi 0, %s112
    %s116 = sphi 0, %s115
    %s132 = sphi 0, %s116
    %s140 = sphi 0, %s142
    %s143 = sphi 0, %s140
    %s144 = sphi 0, %s143
    %s160 = sphi 0, %s144
  $region4: #{_forward.14} parent=0 // loop_header_branch
    %13 = sbr.rel (%p11) target = $region8
  $region5: #{_forward.14} parent=0 // loop_body
    %s15 = ssub.s32 %s10, 1
    %s16 = ssub.s32 %s10, 2
    %s23 = sadd.s32 1, %s18
    %p24 = scmp.ge.s32.totalorder %s23, 1
    %s25 = scalar_select %p24, 0, %s23
    %s26 = sadd.s32 1, %s17
    %s27 = scalar_select %p24, %s26, %s17
    %p28 = scmp.ge.s32.totalorder %s27, 2
    %s29 = scalar_select %p28, 0, %s27
    %s30 = ssub.s32 %s17, %s29
    %s31 = ssub.s32 %s18, %s25
    %s32 = sor.u32 %s30, %s31
    %p33 = scmp.eq.s32.totalorder %s32, 0
    %s35 = sadd.s32 %s34, 1
    %s36 = scalar_select %p33, %s34, %s35
    %p39 = pneg %p33
    %p40 = scmp.eq.s32.totalorder %s10, 1
    %p41 = por %p39, %p40
    %p42 = scmp.ne.s32.totalorder %s34, %s37
    %p43 = scmp.eq.s32.totalorder %s10, 0
    %p44 = por %p42, %p43
    %p45 = scmp.ne.s32.totalorder %s34, %s37
    %p46 = scmp.eq.s32.totalorder %s15, 1
    %p47 = por %p45, %p46
    %p48 = scmp.ne.s32.totalorder %s37, %s38
    %p49 = scmp.eq.s32.totalorder %s15, 0
    %p50 = por %p48, %p49
    %p51 = scmp.ne.s32.totalorder %s37, %s38
    %p52 = scmp.eq.s32.totalorder %s16, 1
    %p53 = por %p51, %p52
    %p55 = scmp.ne.s32.totalorder %s38, %s54
    %p56 = scmp.eq.s32.totalorder %s16, 0
    %p57 = por %p55, %p56
    %s58 = ssub.s32 %s17, %s29
    %p59 = scmp.eq.s32.totalorder %s58, 0
    %s61 = sadd.s32 %s60, 1
    %s62 = scalar_select %p59, %s60, %s61
    %p65 = pneg %p59
    %p66 = scmp.eq.s32.totalorder %s10, 1
    %p67 = por %p65, %p66
    %p68 = scmp.ne.s32.totalorder %s60, %s63
    %p69 = scmp.eq.s32.totalorder %s10, 0
    %p70 = por %p68, %p69
    %p71 = scmp.ne.s32.totalorder %s60, %s63
    %p72 = scmp.eq.s32.totalorder %s15, 1
    %p73 = por %p71, %p72
    %p74 = scmp.ne.s32.totalorder %s63, %s64
    %p75 = scmp.eq.s32.totalorder %s15, 0
    %p76 = por %p74, %p75
    %p77 = scmp.ne.s32.totalorder %s63, %s64
    %p78 = scmp.eq.s32.totalorder %s16, 1
    %p79 = por %p77, %p78
    %p81 = scmp.ne.s32.totalorder %s64, %s80
    %p82 = scmp.eq.s32.totalorder %s16, 0
    %p83 = por %p81, %p82
    %s84 = ssub.s32 %s17, %s29
    %p85 = scmp.eq.s32.totalorder %s84, 0
    %s87 = sadd.s32 %s86, 1
    %s88 = scalar_select %p85, %s86, %s87
    %p91 = pneg %p85
    %p92 = scmp.eq.s32.totalorder %s10, 1
    %p93 = por %p91, %p92
    %p94 = scmp.ne.s32.totalorder %s86, %s89
    %p95 = scmp.eq.s32.totalorder %s10, 0
    %p96 = por %p94, %p95
    %p97 = scmp.ne.s32.totalorder %s86, %s89
    %p98 = scmp.eq.s32.totalorder %s15, 1
    %p99 = por %p97, %p98
    %p100 = scmp.ne.s32.totalorder %s89, %s90
    %p101 = scmp.eq.s32.totalorder %s15, 0
    %p102 = por %p100, %p101
    %p103 = scmp.ne.s32.totalorder %s89, %s90
    %p104 = scmp.eq.s32.totalorder %s16, 1
    %p105 = por %p103, %p104
    %p107 = scmp.ne.s32.totalorder %s90, %s106
    %p108 = scmp.eq.s32.totalorder %s16, 0
    %p109 = por %p107, %p108
    %s110 = ssub.s32 %s17, %s29
    %p111 = scmp.eq.s32.totalorder %s110, 0
    %s113 = sadd.s32 %s112, 1
    %s114 = scalar_select %p111, %s112, %s113
    %p117 = pneg %p111
    %p118 = scmp.eq.s32.totalorder %s10, 1
    %p119 = por %p117, %p118
    %p120 = scmp.ne.s32.totalorder %s112, %s115
    %p121 = scmp.eq.s32.totalorder %s10, 0
    %p122 = por %p120, %p121
    %p123 = scmp.ne.s32.totalorder %s112, %s115
    %p124 = scmp.eq.s32.totalorder %s15, 1
    %p125 = por %p123, %p124
    %p126 = scmp.ne.s32.totalorder %s115, %s116
    %p127 = scmp.eq.s32.totalorder %s15, 0
    %p128 = por %p126, %p127
    %p129 = scmp.ne.s32.totalorder %s115, %s116
    %p130 = scmp.eq.s32.totalorder %s16, 1
    %p131 = por %p129, %p130
    %p133 = scmp.ne.s32.totalorder %s116, %s132
    %p134 = scmp.eq.s32.totalorder %s16, 0
    %p135 = por %p133, %p134
    %s136 = ssub.s32 %s17, %s29
    %s137 = ssub.s32 %s18, %s25
    %s138 = sor.u32 %s136, %s137
    %p139 = scmp.eq.s32.totalorder %s138, 0
    %s141 = sadd.s32 %s140, 1
    %s142 = scalar_select %p139, %s140, %s141
    %p145 = pneg %p139
    %p146 = scmp.eq.s32.totalorder %s10, 1
    %p147 = por %p145, %p146
    %p148 = scmp.ne.s32.totalorder %s140, %s143
    %p149 = scmp.eq.s32.totalorder %s10, 0
    %p150 = por %p148, %p149
    %p151 = scmp.ne.s32.totalorder %s140, %s143
    %p152 = scmp.eq.s32.totalorder %s15, 1
    %p153 = por %p151, %p152
    %p154 = scmp.ne.s32.totalorder %s143, %s144
    %p155 = scmp.eq.s32.totalorder %s15, 0
    %p156 = por %p154, %p155
    %p157 = scmp.ne.s32.totalorder %s143, %s144
    %p158 = scmp.eq.s32.totalorder %s16, 1
    %p159 = por %p157, %p158
    %p161 = scmp.ne.s32.totalorder %s144, %s160
    %p162 = scmp.eq.s32.totalorder %s16, 0
    %p163 = por %p161, %p162
    %p164 = scmp.le.s32.totalorder 1, %s10
    %p165 = scmp.lt.s32.totalorder %s10, 3
    %p166 = pnand %p164, %p165
    %p167 = pneg %p166
    // Predicated region
    $region9: #{_forward.14} parent=5 // pred_check
      _
    $region10: #{_forward.14} parent=5 // pred_check_branch
      %169 = sbr.rel (%p166) target = $region12
    $region11: #{_forward.14} parent=5 // pred_region
      %s170 = ssub.s32 %s10, 1
    $region12: #{_forward.14} parent=5 // pred_fallthru
      _
    %p171 = scmp.lt.s32.totalorder %s10, 2
    // Predicated region
    $region13: #{_forward.14} parent=5 // pred_check
      %p172 = pneg %p171
    $region14: #{_forward.14} parent=5 // pred_check_branch
      %174 = sbr.rel (%p172) target = $region16
    $region15: #{_forward.14} parent=5 // pred_region
      // Predicated region
      $region17: #{_forward.14} parent=15 // pred_check
        %p175 = pneg %p44
      $region18: #{_forward.14} parent=15 // pred_check_branch
        %177 = sbr.rel (%p175) target = $region20
      $region19: #{_forward.14} parent=15 // pred_region
        %p178 = scmp.lt.s32.totalorder %s17, 1
        %s179 = scalar_select %p178, %s17, 1
        %p180 = scmp.lt.s32.totalorder %s18, 0
        %s181 = scalar_select %p180, %s18, 0
        %s182 = smul.addr %s179, 2
        %s183 = sadd.s32 %s181, %s182
        %s184 = smul.addr %s183, 4
        %s185 = scalar_lea.vmem %s0, %s184
      $region20: #{_forward.14} parent=15 // pred_fallthru
        _
      // Predicated region
      $region21: #{_forward.14} parent=15 // pred_check
        %p186 = pneg %p70
      $region22: #{_forward.14} parent=15 // pred_check_branch
        %188 = sbr.rel (%p186) target = $region24
      $region23: #{_forward.14} parent=15 // pred_region
        %p189 = scmp.lt.s32.totalorder %s17, 1
        %s190 = scalar_select %p189, %s17, 1
        %s191 = smul.addr %s190, 2
        %s192 = smul.addr %s191, 4
        %s193 = scalar_lea.vmem %s1, %s192
      $region24: #{_forward.14} parent=15 // pred_fallthru
        _
      // Predicated region
      $region25: #{_forward.14} parent=15 // pred_check
        %p194 = pneg %p96
      $region26: #{_forward.14} parent=15 // pred_check_branch
        %196 = sbr.rel (%p194) target = $region28
      $region27: #{_forward.14} parent=15 // pred_region
        %p197 = scmp.lt.s32.totalorder %s17, 1
        %s198 = scalar_select %p197, %s17, 1
        %s199 = smul.addr %s198, 2
        %s200 = smul.addr %s199, 4
        %s201 = scalar_lea.vmem %s2, %s200
      $region28: #{_forward.14} parent=15 // pred_fallthru
        _
      // Predicated region
      $region29: #{_forward.14} parent=15 // pred_check
        %p202 = pneg %p122
      $region30: #{_forward.14} parent=15 // pred_check_branch
        %204 = sbr.rel (%p202) target = $region32
      $region31: #{_forward.14} parent=15 // pred_region
        %p205 = scmp.lt.s32.totalorder %s17, 1
        %s206 = scalar_select %p205, %s17, 1
        %s207 = scalar_lea.vmem %s3, %s206
      $region32: #{_forward.14} parent=15 // pred_fallthru
        _
    $region16: #{_forward.14} parent=5 // pred_fallthru
      _
    %p208 = scmp.le.s32.totalorder 1, %s10
    %p209 = scmp.lt.s32.totalorder %s10, 3
    %p210 = pnand %p208, %p209
    %p211 = pneg %p210
    // Predicated region
    $region33: #{_forward.14} parent=5 // pred_check
      _
    $region34: #{_forward.14} parent=5 // pred_check_branch
      %213 = sbr.rel (%p210) target = $region36
    $region35: #{_forward.14} parent=5 // pred_region
      %s214 = ssub.s32 %s10, 1
      %p215 = scmp.lt.s32.totalorder %s19, 1
      %s216 = scalar_select %p215, %s19, 1
      %p217 = scmp.lt.s32.totalorder %s20, 0
      %s218 = scalar_select %p217, %s20, 0
      %s219 = smul.addr %s216, 2
      %s220 = sadd.s32 %s218, %s219
      %s221 = smul.addr %s220, 4
      %s222 = scalar_lea.vmem %s0, %s221
      %p223 = pneg %p50
      %p224 = pneg %p47
      %p225 = scmp.lt.s32.totalorder %s19, 1
      %s226 = scalar_select %p225, %s19, 1
      %s227 = smul.addr %s226, 2
      %s228 = smul.addr %s227, 4
      %s229 = scalar_lea.vmem %s1, %s228
      %p230 = pneg %p76
      %p231 = pneg %p73
      %p232 = scmp.lt.s32.totalorder %s19, 1
      %s233 = scalar_select %p232, %s19, 1
      %s234 = smul.addr %s233, 2
      %s235 = smul.addr %s234, 4
      %s236 = scalar_lea.vmem %s2, %s235
      %p237 = pneg %p102
      %p238 = pneg %p99
      %p239 = scmp.lt.s32.totalorder %s19, 1
      %s240 = scalar_select %p239, %s19, 1
      %s241 = scalar_lea.vmem %s3, %s240
      %p242 = pneg %p128
      %p243 = pneg %p125
      %p244 = pneg %p156
      %p245 = pneg %p153
      %p246 = scmp.lt.s32.totalorder %s19, 1
      %s247 = scalar_select %p246, %s19, 1
      %p248 = scmp.lt.s32.totalorder %s20, 0
      %s249 = scalar_select %p248, %s20, 0
      %s250 = smul.addr %s247, 2
      %s251 = sadd.s32 %s249, %s250
      %s252 = smul.addr %s251, 4
      %s253 = scalar_lea.vmem %s4, %s252
      %p254 = scmp.lt.s32.totalorder %s19, 1
      %s255 = scalar_select %p254, %s19, 1
      %p256 = scmp.lt.s32.totalorder %s20, 0
      %s257 = scalar_select %p256, %s20, 0
      %s258 = smul.addr %s255, 2
      %s259 = sadd.s32 %s257, %s258
      %s260 = smul.addr %s259, 4
      %s261 = scalar_lea.vmem %s0, %s260
      %p262 = scmp.lt.s32.totalorder %s19, 1
      %s263 = scalar_select %p262, %s19, 1
      %s264 = smul.addr %s263, 2
      %s265 = smul.addr %s264, 4
      %s266 = scalar_lea.vmem %s1, %s265
      %p267 = scmp.lt.s32.totalorder %s19, 1
      %s268 = scalar_select %p267, %s19, 1
      %s269 = smul.addr %s268, 2
      %s270 = smul.addr %s269, 4
      %s271 = scalar_lea.vmem %s2, %s270
      %p272 = scmp.lt.s32.totalorder %s19, 1
      %s273 = scalar_select %p272, %s19, 1
      %s274 = scalar_lea.vmem %s3, %s273
      %p275 = scmp.lt.s32.totalorder %s19, 1
      %s276 = scalar_select %p275, %s19, 1
      %p277 = scmp.lt.s32.totalorder %s20, 0
      %s278 = scalar_select %p277, %s20, 0
      %s279 = smul.addr %s276, 2
      %s280 = sadd.s32 %s278, %s279
      %s281 = smul.addr %s280, 4
      %s282 = scalar_lea.vmem %s4, %s281
      %v284 = vld [vmem:[%s261] sm:$0xf]
      %v285 = vld [vmem:[%s261 + $0x4] sm:$0xf]
      %v286 = vld [vmem:[%s266] sm:$0xf]
      %v287 = vld [vmem:[%s266 + $0x4] sm:$0xf]
      %v288 = vld [vmem:[%s271] sm:$0xf]
      %v289 = vld [vmem:[%s271 + $0x4] sm:$0xf]
      %vm290 = vcmask 130048
      %v292 = vsel %vm290, %v284, 0
      %v295 = vsel %vm290, %v286, 0
      %297 = vmatpush.bf16.xpose.msra.mxu0 0
      %298 = vmatpush.bf16.xpose.msra.mxu0 0
      %299 = vmatpush.bf16.xpose.msra.mxu0 0
      %300 = vmatpush.bf16.xpose.msra.mxu0 0
      %301 = vmatpush.bf16.xpose.msra.mxu0 0
      %302 = vmatpush.bf16.xpose.msra.mxu0 0
      %303 = vmatpush.bf16.xpose.msra.mxu0 0
      %304 = vmatpush.bf16.xpose.msra.mxu0 %v295
      %305 = vmatmul.bf16.gmra.mxu0 %v292
      %v306 = vpop.f32.mrf.mxu0
      %v307 = vadd.f32 0.0, %v306
      %v308 = vpop.f32.mrf.mxu0
      %309 = vdwg.mxu0
      %v311 = vsel %vm290, %v285, 0
      %v314 = vsel %vm290, %v287, 0
      %316 = vmatpush.bf16.xpose.msra.mxu0 0
      %317 = vmatpush.bf16.xpose.msra.mxu0 0
      %318 = vmatpush.bf16.xpose.msra.mxu0 0
      %319 = vmatpush.bf16.xpose.msra.mxu0 0
      %320 = vmatpush.bf16.xpose.msra.mxu0 0
      %321 = vmatpush.bf16.xpose.msra.mxu0 0
      %322 = vmatpush.bf16.xpose.msra.mxu0 0
      %323 = vmatpush.bf16.xpose.msra.mxu0 %v314
      %324 = vmatmul.bf16.gmra.mxu0 %v311
      %v325 = vpop.f32.mrf.mxu0
      %v326 = vadd.f32 0.0, %v325
      %v327 = vpop.f32.mrf.mxu0
      %328 = vdwg.mxu0
      %v329 = vmul.f32 %v307, 0.25
      %v330 = vmul.f32 %v326, 0.25
      %v331 = vld [vmem:[%s274] sm:$0x1]
      %v333 = vperm.slane %v331, 0
      %v335 = vadd.f32 %v329, %v333
      %v336 = vadd.f32 %v330, %v333
      %vm337 = vcmask 64512
      %v338 = vsel %vm337, %v335, -inf
      %339 = vmax.xlane.f32.xlu0 %v338
      %v340 = vpop.xlane.xlu0 %339
      %v341 = vsel %vm337, %v336, -inf
      %342 = vmax.xlane.f32.xlu0 %v341
      %v343 = vpop.xlane.xlu0 %342
      %v344 = vsub.f32 %v335, %v340
      %v345 = vsub.f32 %v336, %v343
      %v346 = vmul.f32 %v344, 1.442695
      %v347 = vpow.pop %v346
      %v348 = vmul.f32 %v345, 1.442695
      %v349 = vpow.pop %v348
      %v350 = vsel %vm337, %v347, 0.0
      %351 = vadd.xlane.f32.xlu0 %v350
      %v352 = vpop.xlane.xlu0 %351
      %v353 = vsel %vm337, %v349, 0.0
      %354 = vadd.xlane.f32.xlu0 %v353
      %v355 = vpop.xlane.xlu0 %354
      %v356 = vpack.c.bf16 %v347, %v347
      %v357 = vpack.c.bf16 %v349, %v349
      %v359 = vsel %vm337, %v356, 0
      %vm361 = vcmask 1043456
      %v363 = vsel %vm361, %v288, 0
      %365 = vmatpush.bf16.msra.mxu0 0
      %366 = vmatpush.bf16.msra.mxu0 0
      %367 = vmatpush.bf16.msra.mxu0 0
      %368 = vmatpush.bf16.msra.mxu0 0
      %369 = vmatpush.bf16.msra.mxu0 0
      %370 = vmatpush.bf16.msra.mxu0 0
      %371 = vmatpush.bf16.msra.mxu0 0
      %372 = vmatpush.bf16.msra.mxu0 %v363
      %373 = vmatmul.bf16.gmra.mxu0 %v359
      %v374 = vpop.f32.mrf.mxu0
      %v375 = vadd.f32 0.0, %v374
      %v376 = vpop.f32.mrf.mxu0
      %377 = vdwg.mxu0
      %v379 = vsel %vm337, %v357, 0
      %v382 = vsel %vm361, %v289, 0
      %384 = vmatpush.bf16.msra.mxu0 0
      %385 = vmatpush.bf16.msra.mxu0 0
      %386 = vmatpush.bf16.msra.mxu0 0
      %387 = vmatpush.bf16.msra.mxu0 0
      %388 = vmatpush.bf16.msra.mxu0 0
      %389 = vmatpush.bf16.msra.mxu0 0
      %390 = vmatpush.bf16.msra.mxu0 0
      %391 = vmatpush.bf16.msra.mxu0 %v382
      %392 = vmatmul.bf16.gmra.mxu0 %v379
      %v393 = vpop.f32.mrf.mxu0
      %v394 = vadd.f32 0.0, %v393
      %v395 = vpop.f32.mrf.mxu0
      %396 = vdwg.mxu0
      %v397 = vrcp.pop %v352
      %v398 = vmul.f32 %v352, %v397
      %v399 = vsub.f32 1.0, %v398
      %v400 = vmul.f32 %v397, %v399
      %v401 = vadd.f32 %v397, %v400
      %vm402 = vweird.f32 %v352
      %vm403 = vweird.f32 %v397
      %vm404 = vmor %vm402, %vm403
      %v405 = vsel %vm404, %v397, %v401
      %v406 = vand.u32 2147483647, %v352
      %vm407 = vcmp.eq.f32.partialorder %v406, 8.507059e+37
      %v408 = vand.u32 %v352, 2147483648
      %v409 = vor.u32 1.1754944e-38, %v408
      %v410 = vsel %vm407, %v409, %v405
      %v411 = vmul.f32 1.0, %v410
      %v412 = vrcp.pop %v355
      %v413 = vmul.f32 %v355, %v412
      %v414 = vsub.f32 1.0, %v413
      %v415 = vmul.f32 %v412, %v414
      %v416 = vadd.f32 %v412, %v415
      %vm417 = vweird.f32 %v355
      %vm418 = vweird.f32 %v412
      %vm419 = vmor %vm417, %vm418
      %v420 = vsel %vm419, %v412, %v416
      %v421 = vand.u32 2147483647, %v355
      %vm422 = vcmp.eq.f32.partialorder %v421, 8.507059e+37
      %v423 = vand.u32 %v355, 2147483648
      %v424 = vor.u32 1.1754944e-38, %v423
      %v425 = vsel %vm422, %v424, %v420
      %v426 = vmul.f32 1.0, %v425
      %v427 = vmul.f32 %v375, %v411
      %v428 = vmul.f32 %v394, %v426
      %v429 = vpack.c.bf16 %v427, %v427
      %v430 = vpack.c.bf16 %v428, %v428
      %vm431 = vcmask 125952
      %432 = vst.msk [vmem:[%s282] sm:$0xf] %vm431, %v429
      %433 = vst.msk [vmem:[%s282 + $0x4] sm:$0xf] %vm431, %v430
      %p434 = scmp.lt.s32.totalorder %s19, 1
      %s435 = scalar_select %p434, %s19, 1
      %p436 = scmp.lt.s32.totalorder %s20, 0
      %s437 = scalar_select %p436, %s20, 0
      %s438 = smul.addr %s435, 2
      %s439 = sadd.s32 %s437, %s438
      %s440 = smul.addr %s439, 4
      %s441 = scalar_lea.vmem %s4, %s440
      // Predicated region
      $region37: #{_forward.14} parent=35 // pred_check
        %p442 = pneg %p153
      $region38: #{_forward.14} parent=35 // pred_check_branch
        %444 = sbr.rel (%p442) target = $region40
      $region39: #{_forward.14} parent=35 // pred_region
        _
      $region40: #{_forward.14} parent=35 // pred_fallthru
        _
    $region36: #{_forward.14} parent=5 // pred_fallthru
      _
    %p445 = scmp.le.s32.totalorder 2, %s10
    // Predicated region
    $region41: #{_forward.14} parent=5 // pred_check
      %p446 = pneg %p445
    $region42: #{_forward.14} parent=5 // pred_check_branch
      %448 = sbr.rel (%p446) target = $region44
    $region43: #{_forward.14} parent=5 // pred_region
      %s449 = ssub.s32 %s10, 2
      // Predicated region
      $region45: #{_forward.14} parent=43 // pred_check
        %p450 = pneg %p159
      $region46: #{_forward.14} parent=43 // pred_check_branch
        %452 = sbr.rel (%p450) target = $region48
      $region47: #{_forward.14} parent=43 // pred_region
        %p453 = scmp.lt.s32.totalorder %s21, 1
        %s454 = scalar_select %p453, %s21, 1
        %p455 = scmp.lt.s32.totalorder %s22, 0
        %s456 = scalar_select %p455, %s22, 0
        %s457 = smul.addr %s454, 2
        %s458 = sadd.s32 %s456, %s457
        %s459 = smul.addr %s458, 4
        %s460 = scalar_lea.vmem %s4, %s459
      $region48: #{_forward.14} parent=43 // pred_fallthru
        _
    $region44: #{_forward.14} parent=5 // pred_fallthru
      _
  $region6: #{_forward.14} parent=0 // loop_footer
    %s14 = sadd.s32 1, %s10
  $region7: #{_forward.14} parent=0 // loop_footer_branch
    %9 = sbr.rel target = $region3
  $region8: #{_forward.14} parent=0 // loop_exit
    _

// kernel: _forward.12
$region0: #{_forward.12}
  #allocation0 [shape = 'u32[]', space=smem, size = 0x4, offset = 0x4, fixed_abs, tag = 'smem constant byte address 0x4 - core index']
  #allocation1 [shape = 'u32[72,128]{1,0:T(1,128)}', space=vmem, size = 0x9000, scoped, tag = 'internal scratch']
  %s0 = inlined_call_operand.vmem [shape: bf16[16,32], index: 0, kind: input, shape index: {}]
  %s1 = inlined_call_operand.vmem [shape: bf16[1,32], index: 1, kind: input, shape index: {}]
  %s2 = inlined_call_operand.vmem [shape: bf16[1,32], index: 2, kind: input, shape index: {}]
  %s3 = inlined_call_operand.vmem [shape: bf16[16,32], index: 3, kind: output, shape index: {}]
  %s4 = sld [smem:[#allocation0]]
  $region22: #{_forward.12} parent=0
    _
  %s6 = ssub.s32 1, %s4
  %s7 = scalar_select 0, %s6, %s4
  // Predicated region
  $region2: #{_forward.12} parent=0 // pred_check
    _
  $region3: #{_forward.12} parent=0 // pred_check_branch
    %9 = sbr.rel (0) target = $region5
  $region4: #{_forward.12} parent=0 // pred_region
    _
  $region5: #{_forward.12} parent=0 // pred_fallthru
    _
  // Predicated region
  $region6: #{_forward.12} parent=0 // pred_check
    _
  $region7: #{_forward.12} parent=0 // pred_check_branch
    %11 = sbr.rel (0) target = $region9
  $region8: #{_forward.12} parent=0 // pred_region
    _
  $region9: #{_forward.12} parent=0 // pred_fallthru
    _
  // Predicated region
  $region10: #{_forward.12} parent=0 // pred_check
    _
  $region11: #{_forward.12} parent=0 // pred_check_branch
    %13 = sbr.rel (0) target = $region13
  $region12: #{_forward.12} parent=0 // pred_region
    _
  $region13: #{_forward.12} parent=0 // pred_fallthru
    _
  %v14 = vld [vmem:[%s0] sm:$0xf]
  %v15 = vld [vmem:[%s0 + $0x4] sm:$0xf]
  %v16 = vunpack.c.l.bf16 %v14
  %v17 = vunpack.c.l.bf16 %v15
  %vm18 = vcmask 261120
  %v19 = vsel %vm18, %v16, 0.0
  %20 = vadd.xlane.f32.xlu0 %v19
  %v21 = vpop.xlane.xlu0 %20
  %v22 = vsel %vm18, %v17, 0.0
  %23 = vadd.xlane.f32.xlu0 %v22
  %v24 = vpop.xlane.xlu0 %23
  %v25 = vrcp.pop 32.0
  %v26 = vmul.f32 32.0, %v25
  %v27 = vsub.f32 1.0, %v26
  %v28 = vmul.f32 %v25, %v27
  %v29 = vadd.f32 %v25, %v28
  %vm30 = vweird.f32 %v25
  %v31 = vsel %vm30, %v25, %v29
  %v32 = vmul.f32 %v21, %v31
  %v33 = vmul.f32 %v24, %v31
  %v34 = vsub.f32 %v16, %v32
  %v35 = vsub.f32 %v17, %v33
  %v36 = vmul.f32 %v34, %v34
  %v37 = vmul.f32 %v35, %v35
  %v38 = vsel %vm18, %v36, 0.0
  %39 = vadd.xlane.f32.xlu0 %v38
  %v40 = vpop.xlane.xlu0 %39
  %v41 = vsel %vm18, %v37, 0.0
  %42 = vadd.xlane.f32.xlu0 %v41
  %v43 = vpop.xlane.xlu0 %42
  %v44 = vmul.f32 %v40, %v31
  %v45 = vmul.f32 %v43, %v31
  %v46 = vadd.f32 %v44, 1e-12
  %v47 = vadd.f32 %v45, 1e-12
  %v48 = vrsqrt.pop %v46
  %v49 = vmul.f32 %v48, %v46
  %v50 = vmul.f32 %v49, %v48
  %v51 = vmul.f32 0.5, %v50
  %v52 = vsub.f32 1.5, %v51
  %v53 = vmul.f32 %v48, %v52
  %vm54 = vweird.f32 %v46
  %vm55 = vweird.f32 %v48
  %vm56 = vmor %vm54, %vm55
  %v57 = vsel %vm56, %v48, %v53
  %v58 = vrsqrt.pop %v47
  %v59 = vmul.f32 %v58, %v47
  %v60 = vmul.f32 %v59, %v58
  %v61 = vmul.f32 0.5, %v60
  %v62 = vsub.f32 1.5, %v61
  %v63 = vmul.f32 %v58, %v62
  %vm64 = vweird.f32 %v47
  %vm65 = vweird.f32 %v58
  %vm66 = vmor %vm64, %vm65
  %v67 = vsel %vm66, %v58, %v63
  %v68 = vmul.f32 %v34, %v57
  %v69 = vmul.f32 %v35, %v67
  %v70 = vld [vmem:[%s1] sm:$0x1]
  %v71 = vunpack.c.l.bf16 %v70
  %v72 = vperm.slane %v71, 0
  %v73 = vmul.f32 %v68, %v72
  %v74 = vmul.f32 %v69, %v72
  %v75 = vld [vmem:[%s2] sm:$0x1]
  %v76 = vunpack.c.l.bf16 %v75
  %v77 = vperm.slane %v76, 0
  %v78 = vadd.f32 %v73, %v77
  %v79 = vadd.f32 %v74, %v77
  %v80 = vpack.c.bf16 %v78, %v78
  %v81 = vpack.c.bf16 %v79, %v79
  %vm82 = vcmask 257024
  %83 = vst.msk [vmem:[%s3] sm:$0xf] %vm82, %v80
  %84 = vst.msk [vmem:[%s3 + $0x4] sm:$0xf] %vm82, %v81
  // Predicated region
  $region14: #{_forward.12} parent=0 // pred_check
    _
  $region15: #{_forward.12} parent=0 // pred_check_branch
    %86 = sbr.rel (0) target = $region17
  $region16: #{_forward.12} parent=0 // pred_region
    _
  $region17: #{_forward.12} parent=0 // pred_fallthru
    _
  // Predicated region
  $region18: #{_forward.12} parent=0 // pred_check
    _
  $region19: #{_forward.12} parent=0 // pred_check_branch
    %88 = sbr.rel (0) target = $region21
  $region20: #{_forward.12} parent=0 // pred_region
    _
  $region21: #{_forward.12} parent=0 // pred_fallthru
    _

// kernel: _forward.13
$region0: #{_forward.13}
  #allocation0 [shape = 'u32[]', space=smem, size = 0x4, offset = 0x4, fixed_abs, tag = 'smem constant byte address 0x4 - core index']
  #allocation1 [shape = 'u32[72,128]{1,0:T(1,128)}', space=vmem, size = 0x9000, scoped, tag = 'internal scratch']
  %s0 = inlined_call_operand.vmem [shape: bf16[16,32], index: 0, kind: input, shape index: {}]
  %s1 = inlined_call_operand.vmem [shape: bf16[32,96], index: 1, kind: input, shape index: {}]
  %s2 = inlined_call_operand.vmem [shape: bf16[1,96], index: 2, kind: input, shape index: {}]
  %s3 = inlined_call_operand.vmem [shape: bf16[16,96], index: 3, kind: output, shape index: {}]
  %s4 = sld [smem:[#allocation0]]
  $region22: #{_forward.13} parent=0
    _
  %s6 = ssub.s32 1, %s4
  %s7 = scalar_select 0, %s6, %s4
  // Predicated region
  $region2: #{_forward.13} parent=0 // pred_check
    _
  $region3: #{_forward.13} parent=0 // pred_check_branch
    %9 = sbr.rel (0) target = $region5
  $region4: #{_forward.13} parent=0 // pred_region
    _
  $region5: #{_forward.13} parent=0 // pred_fallthru
    _
  // Predicated region
  $region6: #{_forward.13} parent=0 // pred_check
    _
  $region7: #{_forward.13} parent=0 // pred_check_branch
    %11 = sbr.rel (0) target = $region9
  $region8: #{_forward.13} parent=0 // pred_region
    _
  $region9: #{_forward.13} parent=0 // pred_fallthru
    _
  // Predicated region
  $region10: #{_forward.13} parent=0 // pred_check
    _
  $region11: #{_forward.13} parent=0 // pred_check_branch
    %13 = sbr.rel (0) target = $region13
  $region12: #{_forward.13} parent=0 // pred_region
    _
  $region13: #{_forward.13} parent=0 // pred_fallthru
    _
  %v15 = vld [vmem:[%s0] sm:$0xf]
  %v16 = vld [vmem:[%s0 + $0x4] sm:$0xf]
  %v17 = vld [vmem:[%s1] sm:$0xf]
  %v18 = vld [vmem:[%s1 + $0x4] sm:$0xf]
  %v19 = vld [vmem:[%s1 + $0x8] sm:$0xf]
  %v20 = vld [vmem:[%s1 + $0xc] sm:$0xf]
  %v21 = vld [vmem:[%s2] sm:$0x1]
  %v22 = vunpack.c.l.bf16 %v21
  %v23 = vperm.slane %v22, 0
  %v26 = vunpack.c.l.b16 %v15
  %v27 = vunpack.c.l.b16 %v16
  %v28 = vpack.c.b16 %v27, %v26
  %v33 = vunpack.c.l.b16 %v17
  %v34 = vunpack.c.l.b16 %v18
  %v35 = vunpack.c.l.b16 %v19
  %v36 = vunpack.c.l.b16 %v20
  %v37 = vpack.c.b16 %v34, %v33
  %v38 = vpack.c.b16 %v36, %v35
  %vm41 = vcmask 261120
  %v43 = vsel %vm41, %v28, 0
  %45 = vmatpush.bf16.msra.mxu0 0
  %46 = vmatpush.bf16.msra.mxu0 0
  %47 = vmatpush.bf16.msra.mxu0 0
  %48 = vmatpush.bf16.msra.mxu0 0
  %49 = vmatpush.bf16.msra.mxu0 0
  %50 = vmatpush.bf16.msra.mxu0 0
  %51 = vmatpush.bf16.msra.mxu0 %v38
  %52 = vmatpush.bf16.msra.mxu0 %v37
  %53 = vmatmul.bf16.gmra.mxu0 %v43
  %v54 = vpop.f32.mrf.mxu0
  %v55 = vadd.f32 %v23, %v54
  %v56 = vpop.f32.mrf.mxu0
  %v57 = vadd.f32 %v23, %v56
  %58 = vdwg.mxu0
  %v59 = vpack.c.bf16 %v55, %v55
  %v60 = vpack.c.bf16 %v57, %v57
  %vm61 = vcmask 781312
  %62 = vst.msk [vmem:[%s3] sm:$0xf] %vm61, %v59
  %63 = vst.msk [vmem:[%s3 + $0x4] sm:$0xf] %vm61, %v60
  // Predicated region
  $region14: #{_forward.13} parent=0 // pred_check
    _
  $region15: #{_forward.13} parent=0 // pred_check_branch
    %65 = sbr.rel (0) target = $region17
  $region16: #{_forward.13} parent=0 // pred_region
    _
  $region17: #{_forward.13} parent=0 // pred_fallthru
    _
  // Predicated region
  $region18: #{_forward.13} parent=0 // pred_check
    _
  $region19: #{_forward.13} parent=0 // pred_check_branch
    %67 = sbr.rel (0) target = $region21
  $region20: #{_forward.13} parent=0 // pred_region
    _
  $region21: #{_forward.13} parent=0 // pred_fallthru
    _

// kernel: _forward.15
$region0: #{_forward.15}
  #allocation0 [shape = 'u32[]', space=smem, size = 0x4, offset = 0x4, fixed_abs, tag = 'smem constant byte address 0x4 - core index']
  #allocation1 [shape = 'u32[72,128]{1,0:T(1,128)}', space=vmem, size = 0x9000, scoped, tag = 'internal scratch']
  #allocation2 [shape = 'f32[8,32]{1,0:T(8,128)}', space=vmem, size = 0x1000, scoped, tag = 'scratch operand']
  %s0 = inlined_call_operand.vmem [shape: bf16[2,2,8,16], index: 0, kind: input, shape index: {}]
  %s1 = inlined_call_operand.vmem [shape: bf16[2,16,32], index: 1, kind: input, shape index: {}]
  %s2 = inlined_call_operand.vmem [shape: bf16[1,32], index: 2, kind: input, shape index: {}]
  %s3 = inlined_call_operand.vmem [shape: bf16[2,8,32], index: 3, kind: input, shape index: {}]
  %s4 = inlined_call_operand.vmem [shape: bf16[1,32], index: 4, kind: input, shape index: {}]
  %s5 = inlined_call_operand.vmem [shape: bf16[1,32], index: 5, kind: input, shape index: {}]
  %s6 = inlined_call_operand.vmem [shape: bf16[2,8,32], index: 6, kind: output, shape index: {}]
  %s7 = sld [smem:[#allocation0]]
  $region65: #{_forward.15} parent=0
    _
  %s9 = ssub.s32 1, %s7
  %s10 = scalar_select 0, %s9, %s7
  loop: start=0, step=1, limit=6
  $region2: #{_forward.15} parent=0 // loop_pre_header
    _
  $region3: #{_forward.15} parent=0 // loop_header
    %s12 = sphi 0, %s16
    %p13 = scmp.ge.s32.totalorder %s12, 6
    %s19 = sphi 0, %s38
    %s20 = sphi 0, %s34
    %s21 = sphi 0, %s30
    %s22 = sphi 0, %s19
    %s23 = sphi 0, %s20
    %s24 = sphi 0, %s21
    %s25 = sphi 0, %s22
    %s26 = sphi 0, %s23
    %s27 = sphi 0, %s24
    %s45 = sphi 0, %s47
    %s48 = sphi 0, %s45
    %s49 = sphi 0, %s48
    %s65 = sphi 0, %s49
    %s71 = sphi 0, %s73
    %s74 = sphi 0, %s71
    %s75 = sphi 0, %s74
    %s91 = sphi 0, %s75
    %s95 = sphi 0, %s95
    %s97 = sphi 0, %s95
    %s98 = sphi 0, %s97
    %s112 = sphi 0, %s98
    %s120 = sphi 0, %s122
    %s123 = sphi 0, %s120
    %s124 = sphi 0, %s123
    %s140 = sphi 0, %s124
    %s144 = sphi 0, %s144
    %s146 = sphi 0, %s144
    %s147 = sphi 0, %s146
    %s161 = sphi 0, %s147
    %s165 = sphi 0, %s165
    %s167 = sphi 0, %s165
    %s168 = sphi 0, %s167
    %s182 = sphi 0, %s168
    %s190 = sphi 0, %s192
    %s193 = sphi 0, %s190
    %s194 = sphi 0, %s193
    %s210 = sphi 0, %s194
  $region4: #{_forward.15} parent=0 // loop_header_branch
    %15 = sbr.rel (%p13) target = $region8
  $region5: #{_forward.15} parent=0 // loop_body
    %s17 = ssub.s32 %s12, 1
    %s18 = ssub.s32 %s12, 2
    %s28 = sadd.s32 1, %s21
    %p29 = scmp.ge.s32.totalorder %s28, 2
    %s30 = scalar_select %p29, 0, %s28
    %s31 = sadd.s32 1, %s20
    %s32 = scalar_select %p29, %s31, %s20
    %p33 = scmp.ge.s32.totalorder %s32, 1
    %s34 = scalar_select %p33, 0, %s32
    %s35 = sadd.s32 1, %s19
    %s36 = scalar_select %p33, %s35, %s19
    %p37 = scmp.ge.s32.totalorder %s36, 2
    %s38 = scalar_select %p37, 0, %s36
    %s39 = ssub.s32 %s19, %s38
    %s40 = ssub.s32 %s21, %s30
    %s41 = sor.u32 %s39, %s40
    %s42 = ssub.s32 %s20, %s34
    %s43 = sor.u32 %s41, %s42
    %p44 = scmp.eq.s32.totalorder %s43, 0
    %s46 = sadd.s32 %s45, 1
    %s47 = scalar_select %p44, %s45, %s46
    %p50 = pneg %p44
    %p51 = scmp.eq.s32.totalorder %s12, 3
    %p52 = por %p50, %p51
    %p53 = scmp.ne.s32.totalorder %s45, %s48
    %p54 = scmp.eq.s32.totalorder %s12, 0
    %p55 = por %p53, %p54
    %p56 = scmp.ne.s32.totalorder %s45, %s48
    %p57 = scmp.eq.s32.totalorder %s17, 3
    %p58 = por %p56, %p57
    %p59 = scmp.ne.s32.totalorder %s48, %s49
    %p60 = scmp.eq.s32.totalorder %s17, 0
    %p61 = por %p59, %p60
    %p62 = scmp.ne.s32.totalorder %s48, %s49
    %p63 = scmp.eq.s32.totalorder %s18, 3
    %p64 = por %p62, %p63
    %p66 = scmp.ne.s32.totalorder %s49, %s65
    %p67 = scmp.eq.s32.totalorder %s18, 0
    %p68 = por %p66, %p67
    %s69 = ssub.s32 %s21, %s30
    %p70 = scmp.eq.s32.totalorder %s69, 0
    %s72 = sadd.s32 %s71, 1
    %s73 = scalar_select %p70, %s71, %s72
    %p76 = pneg %p70
    %p77 = scmp.eq.s32.totalorder %s12, 3
    %p78 = por %p76, %p77
    %p79 = scmp.ne.s32.totalorder %s71, %s74
    %p80 = scmp.eq.s32.totalorder %s12, 0
    %p81 = por %p79, %p80
    %p82 = scmp.ne.s32.totalorder %s71, %s74
    %p83 = scmp.eq.s32.totalorder %s17, 3
    %p84 = por %p82, %p83
    %p85 = scmp.ne.s32.totalorder %s74, %s75
    %p86 = scmp.eq.s32.totalorder %s17, 0
    %p87 = por %p85, %p86
    %p88 = scmp.ne.s32.totalorder %s74, %s75
    %p89 = scmp.eq.s32.totalorder %s18, 3
    %p90 = por %p88, %p89
    %p92 = scmp.ne.s32.totalorder %s75, %s91
    %p93 = scmp.eq.s32.totalorder %s18, 0
    %p94 = por %p92, %p93
    %s96 = sadd.s32 %s95, 1
    %p99 = scmp.eq.s32.totalorder %s12, 3
    %p100 = scmp.ne.s32.totalorder %s95, %s97
    %p101 = scmp.eq.s32.totalorder %s12, 0
    %p102 = por %p100, %p101
    %p103 = scmp.ne.s32.totalorder %s95, %s97
    %p104 = scmp.eq.s32.totalorder %s17, 3
    %p105 = por %p103, %p104
    %p106 = scmp.ne.s32.totalorder %s97, %s98
    %p107 = scmp.eq.s32.totalorder %s17, 0
    %p108 = por %p106, %p107
    %p109 = scmp.ne.s32.totalorder %s97, %s98
    %p110 = scmp.eq.s32.totalorder %s18, 3
    %p111 = por %p109, %p110
    %p113 = scmp.ne.s32.totalorder %s98, %s112
    %p114 = scmp.eq.s32.totalorder %s18, 0
    %p115 = por %p113, %p114
    %s116 = ssub.s32 %s19, %s38
    %s117 = ssub.s32 %s20, %s34
    %s118 = sor.u32 %s116, %s117
    %p119 = scmp.eq.s32.totalorder %s118, 0
    %s121 = sadd.s32 %s120, 1
    %s122 = scalar_select %p119, %s120, %s121
    %p125 = pneg %p119
    %p126 = scmp.eq.s32.totalorder %s12, 3
    %p127 = por %p125, %p126
    %p128 = scmp.ne.s32.totalorder %s120, %s123
    %p129 = scmp.eq.s32.totalorder %s12, 0
    %p130 = por %p128, %p129
    %p131 = scmp.ne.s32.totalorder %s120, %s123
    %p132 = scmp.eq.s32.totalorder %s17, 3
    %p133 = por %p131, %p132
    %p134 = scmp.ne.s32.totalorder %s123, %s124
    %p135 = scmp.eq.s32.totalorder %s17, 0
    %p136 = por %p134, %p135
    %p137 = scmp.ne.s32.totalorder %s123, %s124
    %p138 = scmp.eq.s32.totalorder %s18, 3
    %p139 = por %p137, %p138
    %p141 = scmp.ne.s32.totalorder %s124, %s140
    %p142 = scmp.eq.s32.totalorder %s18, 0
    %p143 = por %p141, %p142
    %s145 = sadd.s32 %s144, 1
    %p148 = scmp.eq.s32.totalorder %s12, 3
    %p149 = scmp.ne.s32.totalorder %s144, %s146
    %p150 = scmp.eq.s32.totalorder %s12, 0
    %p151 = por %p149, %p150
    %p152 = scmp.ne.s32.totalorder %s144, %s146
    %p153 = scmp.eq.s32.totalorder %s17, 3
    %p154 = por %p152, %p153
    %p155 = scmp.ne.s32.totalorder %s146, %s147
    %p156 = scmp.eq.s32.totalorder %s17, 0
    %p157 = por %p155, %p156
    %p158 = scmp.ne.s32.totalorder %s146, %s147
    %p159 = scmp.eq.s32.totalorder %s18, 3
    %p160 = por %p158, %p159
    %p162 = scmp.ne.s32.totalorder %s147, %s161
    %p163 = scmp.eq.s32.totalorder %s18, 0
    %p164 = por %p162, %p163
    %s166 = sadd.s32 %s165, 1
    %p169 = scmp.eq.s32.totalorder %s12, 3
    %p170 = scmp.ne.s32.totalorder %s165, %s167
    %p171 = scmp.eq.s32.totalorder %s12, 0
    %p172 = por %p170, %p171
    %p173 = scmp.ne.s32.totalorder %s165, %s167
    %p174 = scmp.eq.s32.totalorder %s17, 3
    %p175 = por %p173, %p174
    %p176 = scmp.ne.s32.totalorder %s167, %s168
    %p177 = scmp.eq.s32.totalorder %s17, 0
    %p178 = por %p176, %p177
    %p179 = scmp.ne.s32.totalorder %s167, %s168
    %p180 = scmp.eq.s32.totalorder %s18, 3
    %p181 = por %p179, %p180
    %p183 = scmp.ne.s32.totalorder %s168, %s182
    %p184 = scmp.eq.s32.totalorder %s18, 0
    %p185 = por %p183, %p184
    %s186 = ssub.s32 %s19, %s38
    %s187 = ssub.s32 %s20, %s34
    %s188 = sor.u32 %s186, %s187
    %p189 = scmp.eq.s32.totalorder %s188, 0
    %s191 = sadd.s32 %s190, 1
    %s192 = scalar_select %p189, %s190, %s191
    %p195 = pneg %p189
    %p196 = scmp.eq.s32.totalorder %s12, 3
    %p197 = por %p195, %p196
    %p198 = scmp.ne.s32.totalorder %s190, %s193
    %p199 = scmp.eq.s32.totalorder %s12, 0
    %p200 = por %p198, %p199
    %p201 = scmp.ne.s32.totalorder %s190, %s193
    %p202 = scmp.eq.s32.totalorder %s17, 3
    %p203 = por %p201, %p202
    %p204 = scmp.ne.s32.totalorder %s193, %s194
    %p205 = scmp.eq.s32.totalorder %s17, 0
    %p206 = por %p204, %p205
    %p207 = scmp.ne.s32.totalorder %s193, %s194
    %p208 = scmp.eq.s32.totalorder %s18, 3
    %p209 = por %p207, %p208
    %p211 = scmp.ne.s32.totalorder %s194, %s210
    %p212 = scmp.eq.s32.totalorder %s18, 0
    %p213 = por %p211, %p212
    %p214 = scmp.le.s32.totalorder 1, %s12
    %p215 = scmp.lt.s32.totalorder %s12, 5
    %p216 = pnand %p214, %p215
    %p217 = pneg %p216
    // Predicated region
    $region9: #{_forward.15} parent=5 // pred_check
      _
    $region10: #{_forward.15} parent=5 // pred_check_branch
      %219 = sbr.rel (%p216) target = $region12
    $region11: #{_forward.15} parent=5 // pred_region
      %s220 = ssub.s32 %s12, 1
      // Predicated region
      $region13: #{_forward.15} parent=11 // pred_check
        %p221 = pneg %p108
      $region14: #{_forward.15} parent=11 // pred_check_branch
        %223 = sbr.rel (%p221) target = $region16
      $region15: #{_forward.15} parent=11 // pred_region
        _
      $region16: #{_forward.15} parent=11 // pred_fallthru
        _
      // Predicated region
      $region17: #{_forward.15} parent=11 // pred_check
        %p224 = pneg %p157
      $region18: #{_forward.15} parent=11 // pred_check_branch
        %226 = sbr.rel (%p224) target = $region20
      $region19: #{_forward.15} parent=11 // pred_region
        _
      $region20: #{_forward.15} parent=11 // pred_fallthru
        _
      // Predicated region
      $region21: #{_forward.15} parent=11 // pred_check
        %p227 = pneg %p178
      $region22: #{_forward.15} parent=11 // pred_check_branch
        %229 = sbr.rel (%p227) target = $region24
      $region23: #{_forward.15} parent=11 // pred_region
        _
      $region24: #{_forward.15} parent=11 // pred_fallthru
        _
    $region12: #{_forward.15} parent=5 // pred_fallthru
      _
    %p230 = scmp.lt.s32.totalorder %s12, 4
    // Predicated region
    $region25: #{_forward.15} parent=5 // pred_check
      %p231 = pneg %p230
    $region26: #{_forward.15} parent=5 // pred_check_branch
      %233 = sbr.rel (%p231) target = $region28
    $region27: #{_forward.15} parent=5 // pred_region
      // Predicated region
      $region29: #{_forward.15} parent=27 // pred_check
        %p234 = pneg %p55
      $region30: #{_forward.15} parent=27 // pred_check_branch
        %236 = sbr.rel (%p234) target = $region32
      $region31: #{_forward.15} parent=27 // pred_region
        %p237 = scmp.lt.s32.totalorder %s19, 1
        %s238 = scalar_select %p237, %s19, 1
        %p239 = scmp.lt.s32.totalorder %s21, 1
        %s240 = scalar_select %p239, %s21, 1
        %p241 = scmp.lt.s32.totalorder %s20, 0
        %s242 = scalar_select %p241, %s20, 0
        %s243 = sadd.s32 %s242, %s240
        %s244 = smul.addr %s238, 2
        %s245 = sadd.s32 %s243, %s244
        %s246 = smul.addr %s245, 4
        %s247 = scalar_lea.vmem %s0, %s246
      $region32: #{_forward.15} parent=27 // pred_fallthru
        _
      // Predicated region
      $region33: #{_forward.15} parent=27 // pred_check
        %p248 = pneg %p81
      $region34: #{_forward.15} parent=27 // pred_check_branch
        %250 = sbr.rel (%p248) target = $region36
      $region35: #{_forward.15} parent=27 // pred_region
        %p251 = scmp.lt.s32.totalorder %s21, 1
        %s252 = scalar_select %p251, %s21, 1
        %s253 = smul.addr %s252, 2
        %s254 = smul.addr %s253, 4
        %s255 = scalar_lea.vmem %s1, %s254
      $region36: #{_forward.15} parent=27 // pred_fallthru
        _
      // Predicated region
      $region37: #{_forward.15} parent=27 // pred_check
        %p256 = pneg %p130
      $region38: #{_forward.15} parent=27 // pred_check_branch
        %258 = sbr.rel (%p256) target = $region40
      $region39: #{_forward.15} parent=27 // pred_region
        %p259 = scmp.lt.s32.totalorder %s19, 1
        %s260 = scalar_select %p259, %s19, 1
        %p261 = scmp.lt.s32.totalorder %s20, 0
        %s262 = scalar_select %p261, %s20, 0
        %s263 = sadd.s32 %s262, %s260
        %s264 = smul.addr %s263, 4
        %s265 = scalar_lea.vmem %s3, %s264
      $region40: #{_forward.15} parent=27 // pred_fallthru
        _
    $region28: #{_forward.15} parent=5 // pred_fallthru
      _
    %p266 = scmp.le.s32.totalorder 1, %s12
    %p267 = scmp.lt.s32.totalorder %s12, 5
    %p268 = pnand %p266, %p267
    %p269 = pneg %p268
    // Predicated region
    $region41: #{_forward.15} parent=5 // pred_check
      _
    $region42: #{_forward.15} parent=5 // pred_check_branch
      %271 = sbr.rel (%p268) target = $region44
    $region43: #{_forward.15} parent=5 // pred_region
      %s272 = ssub.s32 %s12, 1
      %p273 = scmp.lt.s32.totalorder %s22, 1
      %s274 = scalar_select %p273, %s22, 1
      %p275 = scmp.lt.s32.totalorder %s24, 1
      %s276 = scalar_select %p275, %s24, 1
      %p277 = scmp.lt.s32.totalorder %s23, 0
      %s278 = scalar_select %p277, %s23, 0
      %s279 = sadd.s32 %s278, %s276
      %s280 = smul.addr %s274, 2
      %s281 = sadd.s32 %s279, %s280
      %s282 = smul.addr %s281, 4
      %s283 = scalar_lea.vmem %s0, %s282
      %p284 = pneg %p61
      %p285 = pneg %p58
      %p286 = scmp.lt.s32.totalorder %s24, 1
      %s287 = scalar_select %p286, %s24, 1
      %s288 = smul.addr %s287, 2
      %s289 = smul.addr %s288, 4
      %s290 = scalar_lea.vmem %s1, %s289
      %p291 = pneg %p87
      %p292 = pneg %p84
      %p293 = pneg %p108
      %p294 = pneg %p105
      %p295 = scmp.lt.s32.totalorder %s22, 1
      %s296 = scalar_select %p295, %s22, 1
      %p297 = scmp.lt.s32.totalorder %s23, 0
      %s298 = scalar_select %p297, %s23, 0
      %s299 = sadd.s32 %s298, %s296
      %s300 = smul.addr %s299, 4
      %s301 = scalar_lea.vmem %s3, %s300
      %p302 = pneg %p136
      %p303 = pneg %p133
      %p304 = pneg %p157
      %p305 = pneg %p154
      %p306 = pneg %p178
      %p307 = pneg %p175
      %p308 = pneg %p206
      %p309 = pneg %p203
      %p310 = scmp.lt.s32.totalorder %s22, 1
      %s311 = scalar_select %p310, %s22, 1
      %p312 = scmp.lt.s32.totalorder %s23, 0
      %s313 = scalar_select %p312, %s23, 0
      %s314 = sadd.s32 %s313, %s311
      %s315 = smul.addr %s314, 4
      %s316 = scalar_lea.vmem %s6, %s315
      %p317 = scmp.lt.s32.totalorder %s22, 1
      %s318 = scalar_select %p317, %s22, 1
      %p319 = scmp.lt.s32.totalorder %s24, 1
      %s320 = scalar_select %p319, %s24, 1
      %p321 = scmp.lt.s32.totalorder %s23, 0
      %s322 = scalar_select %p321, %s23, 0
      %s323 = sadd.s32 %s322, %s320
      %s324 = smul.addr %s318, 2
      %s325 = sadd.s32 %s323, %s324
      %s326 = smul.addr %s325, 4
      %s327 = scalar_lea.vmem %s0, %s326
      %p328 = scmp.lt.s32.totalorder %s24, 1
      %s329 = scalar_select %p328, %s24, 1
      %s330 = smul.addr %s329, 2
      %s331 = smul.addr %s330, 4
      %s332 = scalar_lea.vmem %s1, %s331
      %p333 = scmp.lt.s32.totalorder %s22, 1
      %s334 = scalar_select %p333, %s22, 1
      %p335 = scmp.lt.s32.totalorder %s23, 0
      %s336 = scalar_select %p335, %s23, 0
      %s337 = sadd.s32 %s336, %s334
      %s338 = smul.addr %s337, 4
      %s339 = scalar_lea.vmem %s3, %s338
      %p340 = scmp.lt.s32.totalorder %s22, 1
      %s341 = scalar_select %p340, %s22, 1
      %p342 = scmp.lt.s32.totalorder %s23, 0
      %s343 = scalar_select %p342, %s23, 0
      %s344 = sadd.s32 %s343, %s341
      %s345 = smul.addr %s344, 4
      %s346 = scalar_lea.vmem %s6, %s345
      %p348 = scmp.eq.s32.totalorder %s24, 0
      // Predicated region
      $region45: #{_forward.15} parent=43 // pred_check
        %p349 = pneg %p348
      $region46: #{_forward.15} parent=43 // pred_check_branch
        %351 = sbr.rel (%p349) target = $region48
      $region47: #{_forward.15} parent=43 // pred_region
        %vm352 = vcmask 261120
        %353 = vst.msk [vmem:[#allocation2] sm:$0xff] %vm352, 0.0
      $region48: #{_forward.15} parent=43 // pred_fallthru
        _
      %v354 = vld [vmem:[#allocation2] sm:$0xff]
      %v355 = vld [vmem:[%s327] sm:$0xf]
      %v356 = vld [vmem:[%s332] sm:$0xf]
      %v357 = vld [vmem:[%s332 + $0x4] sm:$0xf]
      %v360 = vunpack.c.l.b16 %v356
      %v361 = vunpack.c.l.b16 %v357
      %v362 = vpack.c.b16 %v361, %v360
      %vm364 = vcmask 130048
      %v366 = vsel %vm364, %v355, 0
      %368 = vmatpush.bf16.msra.mxu0 0
      %369 = vmatpush.bf16.msra.mxu0 0
      %370 = vmatpush.bf16.msra.mxu0 0
      %371 = vmatpush.bf16.msra.mxu0 0
      %372 = vmatpush.bf16.msra.mxu0 0
      %373 = vmatpush.bf16.msra.mxu0 0
      %374 = vmatpush.bf16.msra.mxu0 0
      %375 = vmatpush.bf16.msra.mxu0 %v362
      %376 = vmatmul.bf16.gmra.mxu0 %v366
      %v377 = vpop.f32.mrf.mxu0
      %v378 = vadd.f32 0.0, %v377
      %v379 = vpop.f32.mrf.mxu0
      %380 = vdwg.mxu0
      %v381 = vadd.f32 %v354, %v378
      %vm382 = vcmask 261120
      %383 = vst.msk [vmem:[#allocation2] sm:$0xff] %vm382, %v381
      %p384 = scmp.eq.s32.totalorder %s24, 1
      // Predicated region
      $region49: #{_forward.15} parent=43 // pred_check
        %p385 = pneg %p384
      $region50: #{_forward.15} parent=43 // pred_check_branch
        %387 = sbr.rel (%p385) target = $region52
      $region51: #{_forward.15} parent=43 // pred_region
        %v388 = vld [vmem:[#allocation2] sm:$0xff]
        %v389 = vld [vmem:[%s2] sm:$0x1]
        %v390 = vunpack.c.l.bf16 %v389
        %v391 = vperm.slane %v390, 0
        %v392 = vadd.f32 %v388, %v391
        %v393 = vld [vmem:[%s339] sm:$0xf]
        %v394 = vunpack.c.l.bf16 %v393
        %v395 = vadd.f32 %v392, %v394
        %v396 = vsel %vm382, %v395, 0.0
        %397 = vadd.xlane.f32.xlu0 %v396
        %v398 = vpop.xlane.xlu0 %397
        %v399 = vrcp.pop 32.0
        %v400 = vmul.f32 32.0, %v399
        %v401 = vsub.f32 1.0, %v400
        %v402 = vmul.f32 %v399, %v401
        %v403 = vadd.f32 %v399, %v402
        %vm404 = vweird.f32 %v399
        %v405 = vsel %vm404, %v399, %v403
        %v406 = vmul.f32 %v398, %v405
        %v407 = vsub.f32 %v395, %v406
        %v408 = vmul.f32 %v407, %v407
        %v409 = vsel %vm382, %v408, 0.0
        %410 = vadd.xlane.f32.xlu0 %v409
        %v411 = vpop.xlane.xlu0 %410
        %v412 = vmul.f32 %v411, %v405
        %v413 = vadd.f32 %v412, 1e-12
        %v414 = vrsqrt.pop %v413
        %v415 = vmul.f32 %v414, %v413
        %v416 = vmul.f32 %v415, %v414
        %v417 = vmul.f32 0.5, %v416
        %v418 = vsub.f32 1.5, %v417
        %v419 = vmul.f32 %v414, %v418
        %vm420 = vweird.f32 %v413
        %vm421 = vweird.f32 %v414
        %vm422 = vmor %vm420, %vm421
        %v423 = vsel %vm422, %v414, %v419
        %v424 = vmul.f32 %v407, %v423
        %v425 = vld [vmem:[%s4] sm:$0x1]
        %v426 = vunpack.c.l.bf16 %v425
        %v427 = vperm.slane %v426, 0
        %v428 = vmul.f32 %v424, %v427
        %v429 = vld [vmem:[%s5] sm:$0x1]
        %v430 = vunpack.c.l.bf16 %v429
        %v431 = vperm.slane %v430, 0
        %v432 = vadd.f32 %v428, %v431
        %v433 = vpack.c.bf16 %v432, %v432
        %vm434 = vcmask 257024
        %435 = vst.msk [vmem:[%s346] sm:$0xf] %vm434, %v433
      $region52: #{_forward.15} parent=43 // pred_fallthru
        _
      %p436 = scmp.lt.s32.totalorder %s22, 1
      %s437 = scalar_select %p436, %s22, 1
      %p438 = scmp.lt.s32.totalorder %s23, 0
      %s439 = scalar_select %p438, %s23, 0
      %s440 = sadd.s32 %s439, %s437
      %s441 = smul.addr %s440, 4
      %s442 = scalar_lea.vmem %s6, %s441
      // Predicated region
      $region53: #{_forward.15} parent=43 // pred_check
        %p443 = pneg %p203
      $region54: #{_forward.15} parent=43 // pred_check_branch
        %445 = sbr.rel (%p443) target = $region56
      $region55: #{_forward.15} parent=43 // pred_region
        _
      $region56: #{_forward.15} parent=43 // pred_fallthru
        _
    $region44: #{_forward.15} parent=5 // pred_fallthru
      _
    %p446 = scmp.le.s32.totalorder 2, %s12
    // Predicated region
    $region57: #{_forward.15} parent=5 // pred_check
      %p447 = pneg %p446
    $region58: #{_forward.15} parent=5 // pred_check_branch
      %449 = sbr.rel (%p447) target = $region60
    $region59: #{_forward.15} parent=5 // pred_region
      %s450 = ssub.s32 %s12, 2
      // Predicated region
      $region61: #{_forward.15} parent=59 // pred_check
        %p451 = pneg %p209
      $region62: #{_forward.15} parent=59 // pred_check_branch
        %453 = sbr.rel (%p451) target = $region64
      $region63: #{_forward.15} parent=59 // pred_region
        %p454 = scmp.lt.s32.totalorder %s25, 1
        %s455 = scalar_select %p454, %s25, 1
        %p456 = scmp.lt.s32.totalorder %s26, 0
        %s457 = scalar_select %p456, %s26, 0
        %s458 = sadd.s32 %s457, %s455
        %s459 = smul.addr %s458, 4
        %s460 = scalar_lea.vmem %s6, %s459
      $region64: #{_forward.15} parent=59 // pred_fallthru
        _
    $region60: #{_forward.15} parent=5 // pred_fallthru
      _
  $region6: #{_forward.15} parent=0 // loop_footer
    %s16 = sadd.s32 1, %s12
  $region7: #{_forward.15} parent=0 // loop_footer_branch
    %11 = sbr.rel target = $region3
  $region8: #{_forward.15} parent=0 // loop_exit
    _

// kernel: _forward.16
$region0: #{_forward.16}
  #allocation0 [shape = 'u32[]', space=smem, size = 0x4, offset = 0x4, fixed_abs, tag = 'smem constant byte address 0x4 - core index']
  #allocation1 [shape = 'u32[72,128]{1,0:T(1,128)}', space=vmem, size = 0x9000, scoped, tag = 'internal scratch']
  %s0 = inlined_call_operand.vmem [shape: bf16[16,32], index: 0, kind: input, shape index: {}]
  %s1 = inlined_call_operand.vmem [shape: bf16[32,64], index: 1, kind: input, shape index: {}]
  %s2 = inlined_call_operand.vmem [shape: bf16[1,64], index: 2, kind: input, shape index: {}]
  %s3 = inlined_call_operand.vmem [shape: bf16[16,64], index: 3, kind: output, shape index: {}]
  %s4 = sld [smem:[#allocation0]]
  $region22: #{_forward.16} parent=0
    _
  %s6 = ssub.s32 1, %s4
  %s7 = scalar_select 0, %s6, %s4
  // Predicated region
  $region2: #{_forward.16} parent=0 // pred_check
    _
  $region3: #{_forward.16} parent=0 // pred_check_branch
    %9 = sbr.rel (0) target = $region5
  $region4: #{_forward.16} parent=0 // pred_region
    _
  $region5: #{_forward.16} parent=0 // pred_fallthru
    _
  // Predicated region
  $region6: #{_forward.16} parent=0 // pred_check
    _
  $region7: #{_forward.16} parent=0 // pred_check_branch
    %11 = sbr.rel (0) target = $region9
  $region8: #{_forward.16} parent=0 // pred_region
    _
  $region9: #{_forward.16} parent=0 // pred_fallthru
    _
  // Predicated region
  $region10: #{_forward.16} parent=0 // pred_check
    _
  $region11: #{_forward.16} parent=0 // pred_check_branch
    %13 = sbr.rel (0) target = $region13
  $region12: #{_forward.16} parent=0 // pred_region
    _
  $region13: #{_forward.16} parent=0 // pred_fallthru
    _
  %v15 = vld [vmem:[%s0] sm:$0xf]
  %v16 = vld [vmem:[%s0 + $0x4] sm:$0xf]
  %v17 = vld [vmem:[%s1] sm:$0xf]
  %v18 = vld [vmem:[%s1 + $0x4] sm:$0xf]
  %v19 = vld [vmem:[%s1 + $0x8] sm:$0xf]
  %v20 = vld [vmem:[%s1 + $0xc] sm:$0xf]
  %v21 = vld [vmem:[%s2] sm:$0x1]
  %v22 = vunpack.c.l.bf16 %v21
  %v23 = vperm.slane %v22, 0
  %v26 = vunpack.c.l.b16 %v15
  %v27 = vunpack.c.l.b16 %v16
  %v28 = vpack.c.b16 %v27, %v26
  %v33 = vunpack.c.l.b16 %v17
  %v34 = vunpack.c.l.b16 %v18
  %v35 = vunpack.c.l.b16 %v19
  %v36 = vunpack.c.l.b16 %v20
  %v37 = vpack.c.b16 %v34, %v33
  %v38 = vpack.c.b16 %v36, %v35
  %vm41 = vcmask 261120
  %v43 = vsel %vm41, %v28, 0
  %45 = vmatpush.bf16.msra.mxu0 0
  %46 = vmatpush.bf16.msra.mxu0 0
  %47 = vmatpush.bf16.msra.mxu0 0
  %48 = vmatpush.bf16.msra.mxu0 0
  %49 = vmatpush.bf16.msra.mxu0 0
  %50 = vmatpush.bf16.msra.mxu0 0
  %51 = vmatpush.bf16.msra.mxu0 %v38
  %52 = vmatpush.bf16.msra.mxu0 %v37
  %53 = vmatmul.bf16.gmra.mxu0 %v43
  %v54 = vpop.f32.mrf.mxu0
  %v55 = vadd.f32 %v23, %v54
  %v56 = vpop.f32.mrf.mxu0
  %v57 = vadd.f32 %v23, %v56
  %58 = vdwg.mxu0
  %v59 = vmul.f32 %v55, 0.5
  %v60 = vmul.f32 %v57, 0.5
  %v61 = vmul.f32 %v55, 0.044715
  %v62 = vmul.f32 %v57, 0.044715
  %v63 = vmul.f32 %v61, %v55
  %v64 = vmul.f32 %v62, %v57
  %v65 = vmul.f32 %v63, %v55
  %v66 = vmul.f32 %v64, %v57
  %v67 = vadd.f32 %v55, %v65
  %v68 = vadd.f32 %v57, %v66
  %v69 = vmul.f32 %v67, 0.7978846
  %v70 = vmul.f32 %v68, 0.7978846
  %v71 = vtanh.pop %v69
  %v72 = vtanh.pop %v70
  %v73 = vadd.f32 %v71, 1.0
  %v74 = vadd.f32 %v72, 1.0
  %v75 = vmul.f32 %v59, %v73
  %v76 = vmul.f32 %v60, %v74
  %v77 = vpack.c.bf16 %v75, %v75
  %v78 = vpack.c.bf16 %v76, %v76
  %vm79 = vcmask 519168
  %80 = vst.msk [vmem:[%s3] sm:$0xf] %vm79, %v77
  %81 = vst.msk [vmem:[%s3 + $0x4] sm:$0xf] %vm79, %v78
  // Predicated region
  $region14: #{_forward.16} parent=0 // pred_check
    _
  $region15: #{_forward.16} parent=0 // pred_check_branch
    %83 = sbr.rel (0) target = $region17
  $region16: #{_forward.16} parent=0 // pred_region
    _
  $region17: #{_forward.16} parent=0 // pred_fallthru
    _
  // Predicated region
  $region18: #{_forward.16} parent=0 // pred_check
    _
  $region19: #{_forward.16} parent=0 // pred_check_branch
    %85 = sbr.rel (0) target = $region21
  $region20: #{_forward.16} parent=0 // pred_region
    _
  $region21: #{_forward.16} parent=0 // pred_fallthru
    _

// kernel: _forward.17
$region0: #{_forward.17}
  #allocation0 [shape = 'u32[]', space=smem, size = 0x4, offset = 0x4, fixed_abs, tag = 'smem constant byte address 0x4 - core index']
  #allocation1 [shape = 'u32[72,128]{1,0:T(1,128)}', space=vmem, size = 0x9000, scoped, tag = 'internal scratch']
  %s0 = inlined_call_operand.vmem [shape: bf16[16,64], index: 0, kind: input, shape index: {}]
  %s1 = inlined_call_operand.vmem [shape: bf16[64,32], index: 1, kind: input, shape index: {}]
  %s2 = inlined_call_operand.vmem [shape: bf16[1,32], index: 2, kind: input, shape index: {}]
  %s3 = inlined_call_operand.vmem [shape: bf16[16,32], index: 3, kind: input, shape index: {}]
  %s4 = inlined_call_operand.vmem [shape: bf16[1,32], index: 4, kind: input, shape index: {}]
  %s5 = inlined_call_operand.vmem [shape: bf16[1,32], index: 5, kind: input, shape index: {}]
  %s6 = inlined_call_operand.vmem [shape: bf16[16,32], index: 6, kind: output, shape index: {}]
  %s7 = sld [smem:[#allocation0]]
  $region34: #{_forward.17} parent=0
    _
  %s9 = ssub.s32 1, %s7
  %s10 = scalar_select 0, %s9, %s7
  // Predicated region
  $region2: #{_forward.17} parent=0 // pred_check
    _
  $region3: #{_forward.17} parent=0 // pred_check_branch
    %12 = sbr.rel (0) target = $region5
  $region4: #{_forward.17} parent=0 // pred_region
    _
  $region5: #{_forward.17} parent=0 // pred_fallthru
    _
  // Predicated region
  $region6: #{_forward.17} parent=0 // pred_check
    _
  $region7: #{_forward.17} parent=0 // pred_check_branch
    %14 = sbr.rel (0) target = $region9
  $region8: #{_forward.17} parent=0 // pred_region
    _
  $region9: #{_forward.17} parent=0 // pred_fallthru
    _
  // Predicated region
  $region10: #{_forward.17} parent=0 // pred_check
    _
  $region11: #{_forward.17} parent=0 // pred_check_branch
    %16 = sbr.rel (0) target = $region13
  $region12: #{_forward.17} parent=0 // pred_region
    _
  $region13: #{_forward.17} parent=0 // pred_fallthru
    _
  // Predicated region
  $region14: #{_forward.17} parent=0 // pred_check
    _
  $region15: #{_forward.17} parent=0 // pred_check_branch
    %18 = sbr.rel (0) target = $region17
  $region16: #{_forward.17} parent=0 // pred_region
    _
  $region17: #{_forward.17} parent=0 // pred_fallthru
    _
  // Predicated region
  $region18: #{_forward.17} parent=0 // pred_check
    _
  $region19: #{_forward.17} parent=0 // pred_check_branch
    %20 = sbr.rel (0) target = $region21
  $region20: #{_forward.17} parent=0 // pred_region
    _
  $region21: #{_forward.17} parent=0 // pred_fallthru
    _
  // Predicated region
  $region22: #{_forward.17} parent=0 // pred_check
    _
  $region23: #{_forward.17} parent=0 // pred_check_branch
    %22 = sbr.rel (0) target = $region25
  $region24: #{_forward.17} parent=0 // pred_region
    _
  $region25: #{_forward.17} parent=0 // pred_fallthru
    _
  %v24 = vld [vmem:[%s0] sm:$0xf]
  %v25 = vld [vmem:[%s0 + $0x4] sm:$0xf]
  %v26 = vld [vmem:[%s1] sm:$0xf]
  %v27 = vld [vmem:[%s1 + $0x4] sm:$0xf]
  %v28 = vld [vmem:[%s1 + $0x8] sm:$0xf]
  %v29 = vld [vmem:[%s1 + $0xc] sm:$0xf]
  %v30 = vld [vmem:[%s1 + $0x10] sm:$0xf]
  %v31 = vld [vmem:[%s1 + $0x14] sm:$0xf]
  %v32 = vld [vmem:[%s1 + $0x18] sm:$0xf]
  %v33 = vld [vmem:[%s1 + $0x1c] sm:$0xf]
  %v34 = vld [vmem:[%s2] sm:$0x1]
  %v35 = vunpack.c.l.bf16 %v34
  %v36 = vperm.slane %v35, 0
  %v39 = vunpack.c.l.b16 %v24
  %v40 = vunpack.c.l.b16 %v25
  %v41 = vpack.c.b16 %v40, %v39
  %v50 = vunpack.c.l.b16 %v26
  %v51 = vunpack.c.l.b16 %v27
  %v52 = vunpack.c.l.b16 %v28
  %v53 = vunpack.c.l.b16 %v29
  %v54 = vunpack.c.l.b16 %v30
  %v55 = vunpack.c.l.b16 %v31
  %v56 = vunpack.c.l.b16 %v32
  %v57 = vunpack.c.l.b16 %v33
  %v58 = vpack.c.b16 %v51, %v50
  %v59 = vpack.c.b16 %v53, %v52
  %v60 = vpack.c.b16 %v55, %v54
  %v61 = vpack.c.b16 %v57, %v56
  %vm66 = vcmask 523264
  %v68 = vsel %vm66, %v41, 0
  %70 = vmatpush.bf16.msra.mxu0 0
  %71 = vmatpush.bf16.msra.mxu0 0
  %72 = vmatpush.bf16.msra.mxu0 0
  %73 = vmatpush.bf16.msra.mxu0 0
  %74 = vmatpush.bf16.msra.mxu0 %v61
  %75 = vmatpush.bf16.msra.mxu0 %v60
  %76 = vmatpush.bf16.msra.mxu0 %v59
  %77 = vmatpush.bf16.msra.mxu0 %v58
  %78 = vmatmul.bf16.gmra.mxu0 %v68
  %v79 = vpop.f32.mrf.mxu0
  %v80 = vadd.f32 %v36, %v79
  %v81 = vpop.f32.mrf.mxu0
  %v82 = vadd.f32 %v36, %v81
  %83 = vdwg.mxu0
  %v84 = vld [vmem:[%s3] sm:$0xf]
  %v85 = vld [vmem:[%s3 + $0x4] sm:$0xf]
  %v86 = vunpack.c.l.bf16 %v84
  %v87 = vunpack.c.l.bf16 %v85
  %v88 = vadd.f32 %v80, %v86
  %v89 = vadd.f32 %v82, %v87
  %vm90 = vcmask 261120
  %v91 = vsel %vm90, %v88, 0.0
  %92 = vadd.xlane.f32.xlu0 %v91
  %v93 = vpop.xlane.xlu0 %92
  %v94 = vsel %vm90, %v89, 0.0
  %95 = vadd.xlane.f32.xlu0 %v94
  %v96 = vpop.xlane.xlu0 %95
  %v97 = vrcp.pop 32.0
  %v98 = vmul.f32 32.0, %v97
  %v99 = vsub.f32 1.0, %v98
  %v100 = vmul.f32 %v97, %v99
  %v101 = vadd.f32 %v97, %v100
  %vm102 = vweird.f32 %v97
  %v103 = vsel %vm102, %v97, %v101
  %v104 = vmul.f32 %v93, %v103
  %v105 = vmul.f32 %v96, %v103
  %v106 = vsub.f32 %v88, %v104
  %v107 = vsub.f32 %v89, %v105
  %v108 = vmul.f32 %v106, %v106
  %v109 = vmul.f32 %v107, %v107
  %v110 = vsel %vm90, %v108, 0.0
  %111 = vadd.xlane.f32.xlu0 %v110
  %v112 = vpop.xlane.xlu0 %111
  %v113 = vsel %vm90, %v109, 0.0
  %114 = vadd.xlane.f32.xlu0 %v113
  %v115 = vpop.xlane.xlu0 %114
  %v116 = vmul.f32 %v112, %v103
  %v117 = vmul.f32 %v115, %v103
  %v118 = vadd.f32 %v116, 1e-12
  %v119 = vadd.f32 %v117, 1e-12
  %v120 = vrsqrt.pop %v118
  %v121 = vmul.f32 %v120, %v118
  %v122 = vmul.f32 %v121, %v120
  %v123 = vmul.f32 0.5, %v122
  %v124 = vsub.f32 1.5, %v123
  %v125 = vmul.f32 %v120, %v124
  %vm126 = vweird.f32 %v118
  %vm127 = vweird.f32 %v120
  %vm128 = vmor %vm126, %vm127
  %v129 = vsel %vm128, %v120, %v125
  %v130 = vrsqrt.pop %v119
  %v131 = vmul.f32 %v130, %v119
  %v132 = vmul.f32 %v131, %v130
  %v133 = vmul.f32 0.5, %v132
  %v134 = vsub.f32 1.5, %v133
  %v135 = vmul.f32 %v130, %v134
  %vm136 = vweird.f32 %v119
  %vm137 = vweird.f32 %v130
  %vm138 = vmor %vm136, %vm137
  %v139 = vsel %vm138, %v130, %v135
  %v140 = vmul.f32 %v106, %v129
  %v141 = vmul.f32 %v107, %v139
  %v142 = vld [vmem:[%s4] sm:$0x1]
  %v143 = vunpack.c.l.bf16 %v142
  %v144 = vperm.slane %v143, 0
  %v145 = vmul.f32 %v140, %v144
  %v146 = vmul.f32 %v141, %v144
  %v147 = vld [vmem:[%s5] sm:$0x1]
  %v148 = vunpack.c.l.bf16 %v147
  %v149 = vperm.slane %v148, 0
  %v150 = vadd.f32 %v145, %v149
  %v151 = vadd.f32 %v146, %v149
  %v152 = vpack.c.bf16 %v150, %v150
  %v153 = vpack.c.bf16 %v151, %v151
  %vm154 = vcmask 257024
  %155 = vst.msk [vmem:[%s6] sm:$0xf] %vm154, %v152
  %156 = vst.msk [vmem:[%s6 + $0x4] sm:$0xf] %vm154, %v153
  // Predicated region
  $region26: #{_forward.17} parent=0 // pred_check
    _
  $region27: #{_forward.17} parent=0 // pred_check_branch
    %158 = sbr.rel (0) target = $region29
  $region28: #{_forward.17} parent=0 // pred_region
    _
  $region29: #{_forward.17} parent=0 // pred_fallthru
    _
  // Predicated region
  $region30: #{_forward.17} parent=0 // pred_check
    _
  $region31: #{_forward.17} parent=0 // pred_check_branch
    %160 = sbr.rel (0) target = $region33
  $region32: #{_forward.17} parent=0 // pred_region
    _
  $region33: #{_forward.17} parent=0 // pred_fallthru
    _

// kernel: _forward.23
$region0: #{_forward.23}
  #allocation0 [shape = 'u32[]', space=smem, size = 0x4, offset = 0x4, fixed_abs, tag = 'smem constant byte address 0x4 - core index']
  #allocation1 [shape = 'u32[72,128]{1,0:T(1,128)}', space=vmem, size = 0x9000, scoped, tag = 'internal scratch']
  %s0 = inlined_call_operand.vmem [shape: bf16[2,32], index: 0, kind: input, shape index: {}]
  %s1 = inlined_call_operand.vmem [shape: bf16[32,32], index: 1, kind: input, shape index: {}]
  %s2 = inlined_call_operand.vmem [shape: bf16[1,32], index: 2, kind: input, shape index: {}]
  %s3 = inlined_call_operand.vmem [shape: bf16[32,3], index: 3, kind: input, shape index: {}]
  %s4 = inlined_call_operand.vmem [shape: bf16[1,3], index: 4, kind: input, shape index: {}]
  %s5 = inlined_call_operand.vmem [shape: f32[2,3], index: 5, kind: input, shape index: {}]
  %s6 = inlined_call_operand.hbm [shape: f32[2,3], index: 6, kind: output, shape index: {0}]
  %s7 = inlined_call_operand.hbm [shape: f32[1,1], index: 7, kind: output, shape index: {1}]
  %8 = xla_tuple %s6, %s7
  %s9 = sld [smem:[#allocation0]]
  $region42: #{_forward.23} parent=0
    _
  %s11 = ssub.s32 1, %s9
  %s12 = scalar_select 0, %s11, %s9
  $region1: #{_forward.23} parent=0
    #allocation2 [shape = 'u8[1024]{0}', space=vmem, size = 0x400, scoped, tag = 'output window, operand 0, single buffered']
    #allocation3 [shape = 's32[1]{0}', space=sflag, size = 0x4, scoped, tag = 'scoped memory for _forward.23']
    #allocation4 [shape = 'u8[512]{0}', space=vmem, size = 0x400, scoped, tag = 'output window, operand 1, single buffered']
    #allocation5 [shape = 's32[1]{0}', space=sflag, size = 0x4, scoped, tag = 'scoped memory for _forward.23']
    %13 = vsyncpa [#allocation3], 0
    %14 = vsyncpa [#allocation5], 0
    // Predicated region
    $region2: #{_forward.23} parent=1 // pred_check
      _
    $region3: #{_forward.23} parent=1 // pred_check_branch
      %16 = sbr.rel (0) target = $region5
    $region4: #{_forward.23} parent=1 // pred_region
      _
    $region5: #{_forward.23} parent=1 // pred_fallthru
      _
    // Predicated region
    $region6: #{_forward.23} parent=1 // pred_check
      _
    $region7: #{_forward.23} parent=1 // pred_check_branch
      %18 = sbr.rel (0) target = $region9
    $region8: #{_forward.23} parent=1 // pred_region
      _
    $region9: #{_forward.23} parent=1 // pred_fallthru
      _
    // Predicated region
    $region10: #{_forward.23} parent=1 // pred_check
      _
    $region11: #{_forward.23} parent=1 // pred_check_branch
      %20 = sbr.rel (0) target = $region13
    $region12: #{_forward.23} parent=1 // pred_region
      _
    $region13: #{_forward.23} parent=1 // pred_fallthru
      _
    // Predicated region
    $region14: #{_forward.23} parent=1 // pred_check
      _
    $region15: #{_forward.23} parent=1 // pred_check_branch
      %22 = sbr.rel (0) target = $region17
    $region16: #{_forward.23} parent=1 // pred_region
      _
    $region17: #{_forward.23} parent=1 // pred_fallthru
      _
    // Predicated region
    $region18: #{_forward.23} parent=1 // pred_check
      _
    $region19: #{_forward.23} parent=1 // pred_check_branch
      %24 = sbr.rel (0) target = $region21
    $region20: #{_forward.23} parent=1 // pred_region
      _
    $region21: #{_forward.23} parent=1 // pred_fallthru
      _
    // Predicated region
    $region22: #{_forward.23} parent=1 // pred_check
      _
    $region23: #{_forward.23} parent=1 // pred_check_branch
      %26 = sbr.rel (0) target = $region25
    $region24: #{_forward.23} parent=1 // pred_region
      _
    $region25: #{_forward.23} parent=1 // pred_fallthru
      _
    %v28 = vld [vmem:[%s0] sm:$0x1]
    %v29 = vld [vmem:[%s1] sm:$0xf]
    %v30 = vld [vmem:[%s1 + $0x4] sm:$0xf]
    %v31 = vld [vmem:[%s1 + $0x8] sm:$0xf]
    %v32 = vld [vmem:[%s1 + $0xc] sm:$0xf]
    %v33 = vld [vmem:[%s2] sm:$0x1]
    %v34 = vunpack.c.l.bf16 %v33
    %v35 = vperm.slane %v34, 0
    %v40 = vunpack.c.l.b16 %v29
    %v41 = vunpack.c.l.b16 %v30
    %v42 = vunpack.c.l.b16 %v31
    %v43 = vunpack.c.l.b16 %v32
    %v44 = vpack.c.b16 %v41, %v40
    %v45 = vpack.c.b16 %v43, %v42
    %vm48 = vcmask 261120
    %v50 = vsel %vm48, %v28, 0
    %52 = vmatpush.bf16.msra.mxu0 0
    %53 = vmatpush.bf16.msra.mxu0 0
    %54 = vmatpush.bf16.msra.mxu0 0
    %55 = vmatpush.bf16.msra.mxu0 0
    %56 = vmatpush.bf16.msra.mxu0 0
    %57 = vmatpush.bf16.msra.mxu0 0
    %58 = vmatpush.bf16.msra.mxu0 %v45
    %59 = vmatpush.bf16.msra.mxu0 %v44
    %60 = vmatmul.bf16.gmra.mxu0 %v50
    %v61 = vpop.f32.mrf.mxu0
    %v62 = vadd.f32 %v35, %v61
    %v63 = vpop.f32.mrf.mxu0
    %64 = vdwg.mxu0
    %v65 = vtanh.pop %v62
    %v66 = vpack.c.bf16 %v65, %v65
    %v67 = vld [vmem:[%s3] sm:$0xf]
    %v68 = vld [vmem:[%s3 + $0x4] sm:$0xf]
    %v69 = vld [vmem:[%s3 + $0x8] sm:$0xf]
    %v70 = vld [vmem:[%s3 + $0xc] sm:$0xf]
    %v71 = vld [vmem:[%s4] sm:$0x1]
    %v72 = vunpack.c.l.bf16 %v71
    %v73 = vperm.slane %v72, 0
    %v78 = vunpack.c.l.b16 %v67
    %v79 = vunpack.c.l.b16 %v68
    %v80 = vunpack.c.l.b16 %v69
    %v81 = vunpack.c.l.b16 %v70
    %v82 = vpack.c.b16 %v79, %v78
    %v83 = vpack.c.b16 %v81, %v80
    %v87 = vsel %vm48, %v66, 0
    %89 = vmatpush.bf16.msra.mxu0 0
    %90 = vmatpush.bf16.msra.mxu0 0
    %91 = vmatpush.bf16.msra.mxu0 0
    %92 = vmatpush.bf16.msra.mxu0 0
    %93 = vmatpush.bf16.msra.mxu0 0
    %94 = vmatpush.bf16.msra.mxu0 0
    %95 = vmatpush.bf16.msra.mxu0 %v83
    %96 = vmatpush.bf16.msra.mxu0 %v82
    %97 = vmatmul.bf16.gmra.mxu0 %v87
    %v98 = vpop.f32.mrf.mxu0
    %v99 = vadd.f32 %v73, %v98
    %v100 = vpop.f32.mrf.mxu0
    %101 = vdwg.mxu0
    %vm102 = vcmask 17408
    %103 = vst.msk [vmem:[#allocation2] sm:$0x3] %vm102, %v99
    %v104 = vsel %vm102, %v99, -inf
    %105 = vmax.xlane.f32.xlu0 %v104
    %v106 = vpop.xlane.xlu0 %105
    %v107 = vsub.f32 %v99, %v106
    %v108 = vmul.f32 %v107, 1.442695
    %v109 = vpow.pop %v108
    %v110 = vsel %vm102, %v109, 0.0
    %111 = vadd.xlane.f32.xlu0 %v110
    %v112 = vpop.xlane.xlu0 %111
    %v113 = vlog2.pop %v112
    %v114 = vmul.f32 %v113, 0.6931472
    %v115 = vld [vmem:[%s5] sm:$0x3]
    %v116 = vsub.f32 %v107, %v114
    %v117 = vmul.f32 %v115, %v116
    %v118 = vsel %vm102, %v117, 0.0
    %119 = vadd.xlane.f32.xlu0 %v118
    %v120 = vpop.xlane.xlu0 %119
    %v121 = vrot.slane %v120, 4
    %v122 = vadd.f32 %v120, %v121
    %v123 = vrot.slane %v122, 2
    %v124 = vadd.f32 %v122, %v123
    %v125 = vrot.slane %v124, 1
    %v126 = vadd.f32 %v124, %v125
    %s127 = vtos %v126
    %s128 = ssub.f32 0.0, %s127
    %v129 = vrcp.pop 2.0
    %v130 = vmul.f32 2.0, %v129
    %v131 = vsub.f32 1.0, %v130
    %v132 = vmul.f32 %v129, %v131
    %v133 = vadd.f32 %v129, %v132
    %vm134 = vweird.f32 %v129
    %v135 = vsel %vm134, %v129, %v133
    %s136 = vtos %v135
    %s137 = smul.f32 %s128, %s136
    %v138 = vstv %s137
    %vm139 = vcmask 0
    %140 = vst.msk [vmem:[#allocation4] sm:$0x1] %vm139, %v138
    // Predicated region
    $region26: #{_forward.23} parent=1 // pred_check
      _
    $region27: #{_forward.23} parent=1 // pred_check_branch
      %142 = sbr.rel (0) target = $region29
    $region28: #{_forward.23} parent=1 // pred_region
      %144 = vsyncadd [#allocation3], 0
      %s146 = sshll.u32 [#allocation2], 4
      %s147 = int_to_ptr.vmem [resolvable:$true] %s146
      %s148 = sshll.u32 %s6, 4
      %s149 = int_to_ptr.hbm [resolvable:$true] %s148
      %151 = dma.vmem_to_hbm [thread:$0]  %s147, 32, %s149, [#allocation3]
    $region29: #{_forward.23} parent=1 // pred_fallthru
      _
    // Predicated region
    $region30: #{_forward.23} parent=1 // pred_check
      _
    $region31: #{_forward.23} parent=1 // pred_check_branch
      %153 = sbr.rel (0) target = $region33
    $region32: #{_forward.23} parent=1 // pred_region
      %155 = vsyncadd [#allocation5], 0
      %s157 = sshll.u32 [#allocation4], 4
      %s158 = int_to_ptr.vmem [resolvable:$true] %s157
      %s159 = sshll.u32 %s7, 4
      %s160 = int_to_ptr.hbm [resolvable:$true] %s159
      %162 = dma.vmem_to_hbm [thread:$0]  %s158, 16, %s160, [#allocation5]
    $region33: #{_forward.23} parent=1 // pred_fallthru
      _
    // Predicated region
    $region34: #{_forward.23} parent=1 // pred_check
      _
    $region35: #{_forward.23} parent=1 // pred_check_branch
      %164 = sbr.rel (0) target = $region37
    $region36: #{_forward.23} parent=1 // pred_region
      %166 = dma.done [#allocation3], 32
    $region37: #{_forward.23} parent=1 // pred_fallthru
      _
    // Predicated region
    $region38: #{_forward.23} parent=1 // pred_check
      _
    $region39: #{_forward.23} parent=1 // pred_check_branch
      %168 = sbr.rel (0) target = $region41
    $region40: #{_forward.23} parent=1 // pred_region
      %170 = dma.done [#allocation5], 16
    $region41: #{_forward.23} parent=1 // pred_fallthru
      _
    %171 = vsyncpa [#allocation3], 1
    %172 = vsyncpa [#allocation5], 1

</llo_original>
